<compile_context>
chip_gen: v7x
topology: tpu7x:2x2x1
jax: 0.10.0
libtpu: 0.0.40
codegen_flags: <defaults>
</compile_context>

<pallas_src>
import functools

import jax
import jax.numpy as jnp
from jax.experimental import pallas as pl
from jax.experimental.pallas import tpu as pltpu


def _pick_tq(n):
    """Query-column chunk size (lane width of the output store); must divide N."""
    for tq in (128, 64, 32, 16, 8):
        if n % tq == 0:
            return tq
    return n


def _conv2d_nn_kernel(x_ref, w_ref, b_ref, o_ref,
                      keys_scr, ys_scr, oh_scr, *rest,
                      K, N, TQ, magnitude_type):
    """Grid = (batch, query-chunk).

    x_ref:    (1, C_in, N)       f32  flattened tokens (channel-major)
    w_ref:    (K, C_out, C_in)   f32  Conv1d weight, k-major
    b_ref:    (C_out, 1)         f32  Conv1d bias (sublane-major column)
    o_ref:    (1, C_out, TQ)     f32  lane-dense output tile for this chunk
    keys_scr: (C_in, N)          f32  scratch: (normalized) keys, one batch elem
    ys_scr:   (C_out, K*N)       f32  scratch: stacked per-tap projections W_k @ x
    oh_scr:   (K*N, TQ)          f32  scratch: stacked one-hot gather matrix
    rest:     optional (N, 1) f32 scratch with squared key norms (distance mode)
    """
    sq_scr = rest[0] if rest else None
    c = pl.program_id(1)

    # ---- Once per batch element: normalize keys and project the K taps.
    #      Scratch persists across the (sequential, "arbitrary") chunk axis.
    @pl.when(c == 0)
    def _init():
        xv = x_ref[0].astype(jnp.float32)                       # (C_in, N)
        if magnitude_type == "similarity":
            # F.normalize(x, p=2, dim=channel); rsqrt uses the EUP slot.
            inv = jax.lax.rsqrt(jnp.sum(xv * xv, axis=0, keepdims=True) + 1e-24)
            keys_scr[...] = xv * inv
        else:  # 'distance'
            keys_scr[...] = xv
            ones = jnp.ones((xv.shape[0], 1), jnp.float32)
            # ||k_n||^2 as an (N, 1) column (sublane-major), via a tiny matmul.
            sq_scr[...] = jax.lax.dot_general(
                xv * xv, ones,
                dimension_numbers=(((0,), (0,)), ((), ())),
                preferred_element_type=jnp.float32)
        for k in range(K):
            wk = w_ref[k].astype(jnp.float32)                   # (C_out, C_in)
            ys_scr[:, k * N:(k + 1) * N] = jnp.dot(
                wk, xv, preferred_element_type=jnp.float32)     # (C_out, N)

    # ---- Per chunk: scores in (N, TQ) orientation (keys along sublanes,
    #      queries along lanes) -> no transposes anywhere in the k loop.
    keys = keys_scr[...]                                        # (C_in, N)
    qs = pl.multiple_of(c * TQ, TQ)
    q_chunk = keys_scr[:, pl.ds(qs, TQ)]                        # (C_in, TQ)

    # score_T[n, q] = sum_c keys[c, n] * q[c, q].  Contraction depth C_in is
    # tiny, but the MXU slot is otherwise idle so this is effectively free.
    score = jax.lax.dot_general(
        keys, q_chunk,
        dimension_numbers=(((0,), (0,)), ((), ())),
        preferred_element_type=jnp.float32)                     # (N, TQ)
    if magnitude_type != "similarity":
        # -(||k||^2 + ||q||^2 - 2 k.q); the per-query ||q||^2 constant cannot
        # change the per-column top-K ordering, so it is dropped.
        score = 2.0 * score - sq_scr[...]

    row = jax.lax.broadcasted_iota(jnp.int32, (N, TQ), 0)       # key index
    NEG = jnp.float32(-1e30)

    # ---- Sequential top-K selection; one-hots are stacked for a single fused
    #      gather matmul per chunk.
    for k in range(K):
        mx = jnp.max(score, axis=0, keepdims=True)              # (1, TQ)
        cand = jnp.where(score == mx, row, N)                   # lowest-index tie-break
        first = jnp.min(cand, axis=0, keepdims=True)            # (1, TQ)
        hit = row == first                                      # (N, TQ) bool
        oh_scr[k * N:(k + 1) * N, :] = hit.astype(jnp.float32)
        if k + 1 < K:
            score = jnp.where(hit, NEG, score)                  # reuse bool, 1 select

    # Fused gather + all K tap projections as ONE MXU matmul (f32, exact):
    #   (C_out, K*N) @ (K*N, TQ) -> (C_out, TQ)
    acc = jnp.dot(ys_scr[...], oh_scr[...],
                  preferred_element_type=jnp.float32)
    o_ref[0] = (acc + b_ref[...]).astype(o_ref.dtype)           # 128-lane store


def conv2d_nn_forward(x, weight, bias, *, K, magnitude_type="similarity"):
    """x: (B, C_in, H, W) NCHW; weight: (C_out, C_in, K); bias: (C_out,)."""
    assert magnitude_type in ("similarity", "distance")
    B, C_in, H, W_sp = x.shape
    C_out = weight.shape[0]
    N = H * W_sp
    assert K <= N, "K must not exceed the number of tokens"
    TQ = _pick_tq(N)
    n_chunks = N // TQ

    x_flat = x.reshape(B, C_in, N).astype(jnp.float32)               # Flatten(start_dim=2)
    w_kfirst = jnp.transpose(weight, (2, 0, 1)).astype(jnp.float32)  # (K, C_out, C_in)
    b_col = bias.reshape(C_out, 1).astype(jnp.float32)

    kernel = functools.partial(_conv2d_nn_kernel, K=K, N=N, TQ=TQ,
                               magnitude_type=magnitude_type)

    scratch = [
        pltpu.VMEM((C_in, N), jnp.float32),        # keys
        pltpu.VMEM((C_out, K * N), jnp.float32),   # stacked tap projections
        pltpu.VMEM((K * N, TQ), jnp.float32),      # stacked one-hot gather matrix
    ]
    if magnitude_type == "distance":
        scratch.append(pltpu.VMEM((N, 1), jnp.float32))

    # Explicit VMEM budget (v7x has 64 MiB physical / 32 MiB default scoped).
    block_bytes = 4 * (C_in * N + K * C_out * C_in + C_out + C_out * TQ)
    scratch_bytes = 4 * (C_in * N + C_out * K * N + K * N * TQ
                         + (N if magnitude_type == "distance" else 0))
    work_bytes = 4 * 4 * N * TQ                    # score + temporaries, with slack
    vmem_limit = int(min(max(2 * block_bytes + scratch_bytes + work_bytes + (4 << 20),
                             32 << 20), 48 << 20))

    out = pl.pallas_call(
        kernel,
        out_shape=jax.ShapeDtypeStruct((B, C_out, N), jnp.float32),
        grid_spec=pltpu.PrefetchScalarGridSpec(
            num_scalar_prefetch=0,
            grid=(B, n_chunks),
            in_specs=[
                pl.BlockSpec((1, C_in, N), lambda b, c: (b, 0, 0)),
                pl.BlockSpec((K, C_out, C_in), lambda b, c: (0, 0, 0)),
                pl.BlockSpec((C_out, 1), lambda b, c: (0, 0)),
            ],
            out_specs=pl.BlockSpec((1, C_out, TQ), lambda b, c: (b, 0, c)),
            scratch_shapes=scratch,
        ),
        compiler_params=pltpu.CompilerParams(
            dimension_semantics=("parallel", "arbitrary"),
            vmem_limit_bytes=vmem_limit),
    )(x_flat, w_kfirst, b_col)

    # (B, C_out, N) -> NCHW is a pure reshape (no transpose / HBM round trip).
    return out.reshape(B, C_out, H, W_sp)


def reference_forward(x, weight, bias, *, K, magnitude_type="similarity"):
    """Pure-JAX reference of the same semantics (for verification)."""
    B, C_in, H, W_sp = x.shape
    N = H * W_sp
    xf = x.reshape(B, C_in, N).astype(jnp.float32)
    if magnitude_type == "similarity":
        xn = xf / jnp.maximum(jnp.linalg.norm(xf, axis=1, keepdims=True), 1e-12)
        mag = jnp.einsum("bci,bcj->bij", xn, xn)
        idx = jax.lax.top_k(mag, K)[1]                       # (B, N, K)
    else:
        sq = jnp.sum(xf * xf, axis=1)
        dist = sq[:, :, None] + sq[:, None, :] - 2.0 * jnp.einsum("bci,bcj->bij", xf, xf)
        idx = jax.lax.top_k(-dist, K)[1]
    gathered = jax.vmap(lambda xb, ib: xb[:, ib])(xf, idx)   # (B, C_in, N, K)
    out = jnp.einsum("ock,bcik->boi", weight.astype(jnp.float32), gathered)
    out = out + bias.astype(jnp.float32)[None, :, None]
    return out.reshape(B, weight.shape[0], H, W_sp)


if __name__ == "__main__":
    # Small shapes consistent with the module: NCHW input, K == stride.
    B, C_in, H, W_sp = 2, 4, 16, 16
    C_out, K = 8, 3

    key = jax.random.PRNGKey(0)
    kx, kw, kb = jax.random.split(key, 3)
    x = jax.random.normal(kx, (B, C_in, H, W_sp), dtype=jnp.float32)

    # Deterministic Conv1d-style init (uniform in +/- 1/sqrt(C_in*K)).
    bound = 1.0 / (C_in * K) ** 0.5
    weight = jax.random.uniform(kw, (C_out, C_in, K), jnp.float32, -bound, bound)
    bias = jax.random.uniform(kb, (C_out,), jnp.float32, -bound, bound)

    out = conv2d_nn_forward(x, weight, bias, K=K, magnitude_type="similarity")
    out = jax.block_until_ready(out)

    ref = reference_forward(x, weight, bias, K=K, magnitude_type="similarity")
    assert out.shape == (B, C_out, H, W_sp), out.shape
    assert bool(jnp.all(jnp.isfinite(out)))
    max_err = float(jnp.max(jnp.abs(out - ref)))
    assert jnp.allclose(out, ref, rtol=1e-3, atol=1e-3), f"max_err={max_err}"

    print("KERNEL_OK")
</pallas_src>

<mosaic_0001>
module attributes {stable_mosaic.version = 11 : i64} {
  func.func @_conv2d_nn_kernel(%arg0: i32, %arg1: i32, %arg2: memref<1x4x256xf32, #tpu.memory_space<vmem>>, %arg3: memref<3x8x4xf32, #tpu.memory_space<vmem>>, %arg4: memref<8x1xf32, #tpu.memory_space<vmem>>, %arg5: memref<1x8x128xf32, #tpu.memory_space<vmem>>, %arg6: memref<4x256xf32, #tpu.memory_space<vmem>>, %arg7: memref<8x768xf32, #tpu.memory_space<vmem>>, %arg8: memref<768x128xf32, #tpu.memory_space<vmem>>) attributes {dimension_semantics = [#tpu.dimension_semantics<parallel>, #tpu.dimension_semantics<arbitrary>], iteration_bounds = array<i64: 2, 2>, scalar_prefetch = 0 : i64, scratch_operands = 3 : i64, tpu.core_type = #tpu.core_type<tc>, window_params = [{transform_indices = @transform_0, window_bounds = array<i64: 1, 4, 256>}, {pipeline_mode = #tpu.pipeline_mode<synchronous>, transform_indices = @transform_1, window_bounds = array<i64: 3, 8, 4>}, {pipeline_mode = #tpu.pipeline_mode<synchronous>, transform_indices = @transform_2, window_bounds = array<i64: 8, 1>}, {transform_indices = @transform_3, window_bounds = array<i64: 1, 8, 128>}]} {
    %c0_i32 = arith.constant 0 : i32
    %0 = arith.cmpi eq, %arg1, %c0_i32 : i32
    %1 = arith.extui %0 : i1 to i32
    %c0_i32_0 = arith.constant 0 : i32
    %2 = arith.cmpi ne, %1, %c0_i32_0 : i32
    scf.if %2 {
      %c0_27 = arith.constant 0 : index
      %c0_28 = arith.constant 0 : index
      %c0_29 = arith.constant 0 : index
      %62 = vector.load %arg2[%c0_27, %c0_28, %c0_29] : memref<1x4x256xf32, #tpu.memory_space<vmem>>, vector<1x4x256xf32>
      %63 = vector.shape_cast %62 : vector<1x4x256xf32> to vector<4x256xf32>
      %64 = arith.mulf %63, %63 : vector<4x256xf32>
      %cst_30 = arith.constant dense<0.000000e+00> : vector<256xf32>
      %65 = vector.multi_reduction <add>, %64, %cst_30 [0] : vector<4x256xf32> to vector<256xf32>
      %66 = vector.shape_cast %65 : vector<256xf32> to vector<1x256xf32>
      %cst_31 = arith.constant 1.000000e-24 : f32
      %67 = vector.broadcast %cst_31 : f32 to vector<1x256xf32>
      %68 = arith.addf %66, %67 : vector<1x256xf32>
      %69 = math.rsqrt %68 : vector<1x256xf32>
      %70 = vector.broadcast %69 : vector<1x256xf32> to vector<4x256xf32>
      %71 = arith.mulf %63, %70 : vector<4x256xf32>
      %c0_32 = arith.constant 0 : index
      %c0_33 = arith.constant 0 : index
      %72 = vector.load %arg6[%c0_32, %c0_33] : memref<4x256xf32, #tpu.memory_space<vmem>>, vector<4x256xf32>
      tpu.vector_store %arg6[%c0_32, %c0_33], %71 {strides = array<i32>} : memref<4x256xf32, #tpu.memory_space<vmem>>, vector<4x256xf32>,
      %c0_34 = arith.constant 0 : index
      %c0_35 = arith.constant 0 : index
      %c0_36 = arith.constant 0 : index
      %73 = vector.load %arg3[%c0_34, %c0_35, %c0_36] : memref<3x8x4xf32, #tpu.memory_space<vmem>>, vector<1x8x4xf32>
      %74 = vector.shape_cast %73 : vector<1x8x4xf32> to vector<8x4xf32>
      %cst_37 = arith.constant dense<0.000000e+00> : vector<8x256xf32>
      %75 = tpu.matmul %74, %63, %cst_37 {dimension_numbers = #tpu.dot_dimension_numbers<[1], [0], [0], [1], [0, 0, 1, 1], [], []>} : vector<8x4xf32>, vector<4x256xf32>, vector<8x256xf32> -> vector<8x256xf32>
      %c0_38 = arith.constant 0 : index
      %c0_39 = arith.constant 0 : index
      %76 = vector.load %arg7[%c0_38, %c0_39] : memref<8x768xf32, #tpu.memory_space<vmem>>, vector<8x256xf32>
      tpu.vector_store %arg7[%c0_38, %c0_39], %75 {strides = array<i32>} : memref<8x768xf32, #tpu.memory_space<vmem>>, vector<8x256xf32>,
      %c1 = arith.constant 1 : index
      %c0_40 = arith.constant 0 : index
      %c0_41 = arith.constant 0 : index
      %77 = vector.load %arg3[%c1, %c0_40, %c0_41] : memref<3x8x4xf32, #tpu.memory_space<vmem>>, vector<1x8x4xf32>
      %78 = vector.shape_cast %77 : vector<1x8x4xf32> to vector<8x4xf32>
      %cst_42 = arith.constant dense<0.000000e+00> : vector<8x256xf32>
      %79 = tpu.matmul %78, %63, %cst_42 {dimension_numbers = #tpu.dot_dimension_numbers<[1], [0], [0], [1], [0, 0, 1, 1], [], []>} : vector<8x4xf32>, vector<4x256xf32>, vector<8x256xf32> -> vector<8x256xf32>
      %c0_43 = arith.constant 0 : index
      %c256_44 = arith.constant 256 : index
      %80 = vector.load %arg7[%c0_43, %c256_44] : memref<8x768xf32, #tpu.memory_space<vmem>>, vector<8x256xf32>
      tpu.vector_store %arg7[%c0_43, %c256_44], %79 {strides = array<i32>} : memref<8x768xf32, #tpu.memory_space<vmem>>, vector<8x256xf32>,
      %c2 = arith.constant 2 : index
      %c0_45 = arith.constant 0 : index
      %c0_46 = arith.constant 0 : index
      %81 = vector.load %arg3[%c2, %c0_45, %c0_46] : memref<3x8x4xf32, #tpu.memory_space<vmem>>, vector<1x8x4xf32>
      %82 = vector.shape_cast %81 : vector<1x8x4xf32> to vector<8x4xf32>
      %cst_47 = arith.constant dense<0.000000e+00> : vector<8x256xf32>
      %83 = tpu.matmul %82, %63, %cst_47 {dimension_numbers = #tpu.dot_dimension_numbers<[1], [0], [0], [1], [0, 0, 1, 1], [], []>} : vector<8x4xf32>, vector<4x256xf32>, vector<8x256xf32> -> vector<8x256xf32>
      %c0_48 = arith.constant 0 : index
      %c512_49 = arith.constant 512 : index
      %84 = vector.load %arg7[%c0_48, %c512_49] : memref<8x768xf32, #tpu.memory_space<vmem>>, vector<8x256xf32>
      tpu.vector_store %arg7[%c0_48, %c512_49], %83 {strides = array<i32>} : memref<8x768xf32, #tpu.memory_space<vmem>>, vector<8x256xf32>,
    } else {
    }
    %c0 = arith.constant 0 : index
    %c0_1 = arith.constant 0 : index
    %3 = vector.load %arg6[%c0, %c0_1] : memref<4x256xf32, #tpu.memory_space<vmem>>, vector<4x256xf32>
    %c128_i32 = arith.constant 128 : i32
    %4 = arith.muli %arg1, %c128_i32 : i32
    %5 = tpu.assume_multiple %4, 128 : i32
    %c0_2 = arith.constant 0 : index
    %6 = arith.index_cast %5 : i32 to index
    %7 = vector.load %arg6[%c0_2, %6] : memref<4x256xf32, #tpu.memory_space<vmem>>, vector<4x128xf32>
    %cst = arith.constant dense<0.000000e+00> : vector<256x128xf32>
    %8 = tpu.matmul %3, %7, %cst {dimension_numbers = #tpu.dot_dimension_numbers<[0], [0], [1], [1], [0, 1, 1, 1], [], []>} : vector<4x256xf32>, vector<4x128xf32>, vector<256x128xf32> -> vector<256x128xf32>
    %9 = tpu.iota {dimensions = array<i32: 0>} : vector<256x128xi32>
    %cst_3 = arith.constant dense<0xFF800000> : vector<128xf32>
    %10 = vector.multi_reduction <maximumf>, %8, %cst_3 [0] : vector<256x128xf32> to vector<128xf32>
    %11 = vector.shape_cast %10 : vector<128xf32> to vector<1x128xf32>
    %12 = vector.broadcast %11 : vector<1x128xf32> to vector<256x128xf32>
    %13 = arith.cmpf oeq, %8, %12 : vector<256x128xf32>
    %c256_i32 = arith.constant 256 : i32
    %14 = vector.broadcast %c256_i32 : i32 to vector<256x128xi32>
    %15 = arith.select %13, %9, %14 : vector<256x128xi1>, vector<256x128xi32>
    %cst_4 = arith.constant dense<2147483647> : vector<128xi32>
    %16 = vector.multi_reduction <minsi>, %15, %cst_4 [0] : vector<256x128xi32> to vector<128xi32>
    %17 = vector.shape_cast %16 : vector<128xi32> to vector<1x128xi32>
    %18 = vector.broadcast %17 : vector<1x128xi32> to vector<256x128xi32>
    %19 = arith.cmpi eq, %9, %18 : vector<256x128xi32>
    %20 = arith.extui %19 : vector<256x128xi1> to vector<256x128xi32>
    %21 = arith.sitofp %20 : vector<256x128xi32> to vector<256x128xf32>
    %c0_5 = arith.constant 0 : index
    %c0_6 = arith.constant 0 : index
    %22 = vector.load %arg8[%c0_5, %c0_6] : memref<768x128xf32, #tpu.memory_space<vmem>>, vector<256x128xf32>
    tpu.vector_store %arg8[%c0_5, %c0_6], %21 {strides = array<i32>} : memref<768x128xf32, #tpu.memory_space<vmem>>, vector<256x128xf32>,
    %cst_7 = arith.constant -1.000000e+30 : f32
    %23 = vector.broadcast %cst_7 : f32 to vector<256x128xf32>
    %24 = arith.select %19, %23, %8 : vector<256x128xi1>, vector<256x128xf32>
    %cst_8 = arith.constant dense<0xFF800000> : vector<128xf32>
    %25 = vector.multi_reduction <maximumf>, %24, %cst_8 [0] : vector<256x128xf32> to vector<128xf32>
    %26 = vector.shape_cast %25 : vector<128xf32> to vector<1x128xf32>
    %27 = vector.broadcast %26 : vector<1x128xf32> to vector<256x128xf32>
    %28 = arith.cmpf oeq, %24, %27 : vector<256x128xf32>
    %c256_i32_9 = arith.constant 256 : i32
    %29 = vector.broadcast %c256_i32_9 : i32 to vector<256x128xi32>
    %30 = arith.select %28, %9, %29 : vector<256x128xi1>, vector<256x128xi32>
    %cst_10 = arith.constant dense<2147483647> : vector<128xi32>
    %31 = vector.multi_reduction <minsi>, %30, %cst_10 [0] : vector<256x128xi32> to vector<128xi32>
    %32 = vector.shape_cast %31 : vector<128xi32> to vector<1x128xi32>
    %33 = vector.broadcast %32 : vector<1x128xi32> to vector<256x128xi32>
    %34 = arith.cmpi eq, %9, %33 : vector<256x128xi32>
    %35 = arith.extui %34 : vector<256x128xi1> to vector<256x128xi32>
    %36 = arith.sitofp %35 : vector<256x128xi32> to vector<256x128xf32>
    %c256 = arith.constant 256 : index
    %c0_11 = arith.constant 0 : index
    %37 = vector.load %arg8[%c256, %c0_11] : memref<768x128xf32, #tpu.memory_space<vmem>>, vector<256x128xf32>
    tpu.vector_store %arg8[%c256, %c0_11], %36 {strides = array<i32>} : memref<768x128xf32, #tpu.memory_space<vmem>>, vector<256x128xf32>,
    %cst_12 = arith.constant -1.000000e+30 : f32
    %38 = vector.broadcast %cst_12 : f32 to vector<256x128xf32>
    %39 = arith.select %34, %38, %24 : vector<256x128xi1>, vector<256x128xf32>
    %cst_13 = arith.constant dense<0xFF800000> : vector<128xf32>
    %40 = vector.multi_reduction <maximumf>, %39, %cst_13 [0] : vector<256x128xf32> to vector<128xf32>
    %41 = vector.shape_cast %40 : vector<128xf32> to vector<1x128xf32>
    %42 = vector.broadcast %41 : vector<1x128xf32> to vector<256x128xf32>
    %43 = arith.cmpf oeq, %39, %42 : vector<256x128xf32>
    %c256_i32_14 = arith.constant 256 : i32
    %44 = vector.broadcast %c256_i32_14 : i32 to vector<256x128xi32>
    %45 = arith.select %43, %9, %44 : vector<256x128xi1>, vector<256x128xi32>
    %cst_15 = arith.constant dense<2147483647> : vector<128xi32>
    %46 = vector.multi_reduction <minsi>, %45, %cst_15 [0] : vector<256x128xi32> to vector<128xi32>
    %47 = vector.shape_cast %46 : vector<128xi32> to vector<1x128xi32>
    %48 = vector.broadcast %47 : vector<1x128xi32> to vector<256x128xi32>
    %49 = arith.cmpi eq, %9, %48 : vector<256x128xi32>
    %50 = arith.extui %49 : vector<256x128xi1> to vector<256x128xi32>
    %51 = arith.sitofp %50 : vector<256x128xi32> to vector<256x128xf32>
    %c512 = arith.constant 512 : index
    %c0_16 = arith.constant 0 : index
    %52 = vector.load %arg8[%c512, %c0_16] : memref<768x128xf32, #tpu.memory_space<vmem>>, vector<256x128xf32>
    tpu.vector_store %arg8[%c512, %c0_16], %51 {strides = array<i32>} : memref<768x128xf32, #tpu.memory_space<vmem>>, vector<256x128xf32>,
    %c0_17 = arith.constant 0 : index
    %c0_18 = arith.constant 0 : index
    %53 = vector.load %arg7[%c0_17, %c0_18] : memref<8x768xf32, #tpu.memory_space<vmem>>, vector<8x768xf32>
    %c0_19 = arith.constant 0 : index
    %c0_20 = arith.constant 0 : index
    %54 = vector.load %arg8[%c0_19, %c0_20] : memref<768x128xf32, #tpu.memory_space<vmem>>, vector<768x128xf32>
    %cst_21 = arith.constant dense<0.000000e+00> : vector<8x128xf32>
    %55 = tpu.matmul %53, %54, %cst_21 {dimension_numbers = #tpu.dot_dimension_numbers<[1], [0], [0], [1], [0, 0, 1, 1], [], []>} : vector<8x768xf32>, vector<768x128xf32>, vector<8x128xf32> -> vector<8x128xf32>
    %c0_22 = arith.constant 0 : index
    %c0_23 = arith.constant 0 : index
    %56 = vector.load %arg4[%c0_22, %c0_23] : memref<8x1xf32, #tpu.memory_space<vmem>>, vector<8x1xf32>
    %57 = vector.broadcast %56 : vector<8x1xf32> to vector<8x128xf32>
    %58 = arith.addf %55, %57 : vector<8x128xf32>
    %c0_24 = arith.constant 0 : index
    %c0_25 = arith.constant 0 : index
    %c0_26 = arith.constant 0 : index
    %59 = vector.load %arg5[%c0_24, %c0_25, %c0_26] : memref<1x8x128xf32, #tpu.memory_space<vmem>>, vector<1x8x128xf32>
    %60 = vector.shape_cast %59 : vector<1x8x128xf32> to vector<8x128xf32>
    %61 = vector.shape_cast %58 : vector<8x128xf32> to vector<1x8x128xf32>
    tpu.vector_store %arg5[%c0_24, %c0_25, %c0_26], %61 {strides = array<i32>} : memref<1x8x128xf32, #tpu.memory_space<vmem>>, vector<1x8x128xf32>,
    return
  }
  func.func @transform_0(%arg0: i32, %arg1: i32) -> (i32, i32, i32) {
    %c0_i32 = arith.constant 0 : i32
    %c0_i32_0 = arith.constant 0 : i32
    %c0_i32_1 = arith.constant 0 : i32
    return %arg0, %c0_i32, %c0_i32_0 : i32, i32, i32
  }
  func.func @transform_1(%arg0: i32, %arg1: i32) -> (i32, i32, i32) {
    %c0_i32 = arith.constant 0 : i32
    %c0_i32_0 = arith.constant 0 : i32
    %c0_i32_1 = arith.constant 0 : i32
    %c0_i32_2 = arith.constant 0 : i32
    return %c0_i32, %c0_i32_0, %c0_i32_1 : i32, i32, i32
  }
  func.func @transform_2(%arg0: i32, %arg1: i32) -> (i32, i32) {
    %c0_i32 = arith.constant 0 : i32
    %c0_i32_0 = arith.constant 0 : i32
    %c0_i32_1 = arith.constant 0 : i32
    return %c0_i32, %c0_i32_0 : i32, i32
  }
  func.func @transform_3(%arg0: i32, %arg1: i32) -> (i32, i32, i32) {
    %c0_i32 = arith.constant 0 : i32
    %c0_i32_0 = arith.constant 0 : i32
    return %arg0, %c0_i32, %arg1 : i32, i32, i32
  }
}

</mosaic_0001>

<llo_original>
// kernel: tpu_custom_call.1
$region0: #{tpu_custom_call.1}
  #allocation0 [shape = 'u32[]', space=smem, size = 0x4, offset = 0x4, fixed_abs, tag = 'smem constant byte address 0x4 - core index']
  #allocation1 [shape = 'u32[144,128]{1,0:T(1,128)}', space=vmem, size = 0x12000, scoped, tag = 'internal scratch']
  #allocation2 [shape = 'f32[4,256]{1,0:T(4,128)}', space=vmem, size = 0x1000, scoped, tag = 'scratch operand']
  #allocation3 [shape = 'f32[8,768]{1,0:T(8,128)}', space=vmem, size = 0x6000, scoped, tag = 'scratch operand']
  #allocation4 [shape = 'f32[768,128]{1,0:T(8,128)}', space=vmem, size = 0x60000, scoped, tag = 'scratch operand']
  %s0 = inlined_call_operand.vmem [shape: f32[2,4,256], index: 0, kind: input, shape index: {}]
  %s1 = inlined_call_operand.vmem [shape: f32[3,8,4], index: 1, kind: input, shape index: {}]
  %s2 = inlined_call_operand.vmem [shape: f32[8,1], index: 2, kind: input, shape index: {}]
  %s3 = inlined_call_operand.hbm [shape: f32[2,8,256], index: 3, kind: output, shape index: {}]
  %s4 = sld [smem:[#allocation0]]
  $region49: #{tpu_custom_call.1} parent=0
    _
  %s6 = ssub.s32 1, %s4
  %s7 = scalar_select 0, %s6, %s4
  $region1: #{tpu_custom_call.1} parent=0
    #allocation5 [shape = 'u8[8192]{0}', space=vmem, size = 0x2000, scoped, tag = 'output window, operand 0']
    #allocation6 [shape = 's32[2]{0}', space=sflag, size = 0x8, scoped, tag = 'scoped memory for tpu_custom_call.1']
    %8 = vsyncpa [#allocation6], 0
    %s9 = scalar_lea.sflag [#allocation6], 1
    %10 = vsyncpa %s9, 0
    loop: start=0, step=1, limit=6
    $region2: #{tpu_custom_call.1} parent=1 // loop_pre_header
      _
    $region3: #{tpu_custom_call.1} parent=1 // loop_header
      %s12 = sphi 0, %s16
      %p13 = scmp.ge.s32.totalorder %s12, 6
      %s19 = sphi 0, %s31
      %s20 = sphi 0, %s27
      %s21 = sphi 0, %s19
      %s22 = sphi 0, %s20
      %s23 = sphi 0, %s21
      %s24 = sphi 0, %s22
      %s34 = sphi 0, %s36
      %s37 = sphi 0, %s34
      %s38 = sphi 0, %s37
      %s54 = sphi 0, %s38
      %s58 = sphi 0, %s58
      %s60 = sphi 0, %s58
      %s61 = sphi 0, %s60
      %s75 = sphi 0, %s61
      %s79 = sphi 0, %s79
      %s81 = sphi 0, %s79
      %s82 = sphi 0, %s81
      %s96 = sphi 0, %s82
      %s104 = sphi 0, %s106
      %s107 = sphi 0, %s104
      %s108 = sphi 0, %s107
      %s124 = sphi 0, %s108
    $region4: #{tpu_custom_call.1} parent=1 // loop_header_branch
      %15 = sbr.rel (%p13) target = $region8
    $region5: #{tpu_custom_call.1} parent=1 // loop_body
      %s17 = ssub.s32 %s12, 1
      %s18 = ssub.s32 %s12, 2
      %s25 = sadd.s32 1, %s20
      %p26 = scmp.ge.s32.totalorder %s25, 2
      %s27 = scalar_select %p26, 0, %s25
      %s28 = sadd.s32 1, %s19
      %s29 = scalar_select %p26, %s28, %s19
      %p30 = scmp.ge.s32.totalorder %s29, 2
      %s31 = scalar_select %p30, 0, %s29
      %s32 = ssub.s32 %s19, %s31
      %p33 = scmp.eq.s32.totalorder %s32, 0
      %s35 = sadd.s32 %s34, 1
      %s36 = scalar_select %p33, %s34, %s35
      %p39 = pneg %p33
      %p40 = scmp.eq.s32.totalorder %s12, 3
      %p41 = por %p39, %p40
      %p42 = scmp.ne.s32.totalorder %s34, %s37
      %p43 = scmp.eq.s32.totalorder %s12, 0
      %p44 = por %p42, %p43
      %p45 = scmp.ne.s32.totalorder %s34, %s37
      %p46 = scmp.eq.s32.totalorder %s17, 3
      %p47 = por %p45, %p46
      %p48 = scmp.ne.s32.totalorder %s37, %s38
      %p49 = scmp.eq.s32.totalorder %s17, 0
      %p50 = por %p48, %p49
      %p51 = scmp.ne.s32.totalorder %s37, %s38
      %p52 = scmp.eq.s32.totalorder %s18, 3
      %p53 = por %p51, %p52
      %p55 = scmp.ne.s32.totalorder %s38, %s54
      %p56 = scmp.eq.s32.totalorder %s18, 0
      %p57 = por %p55, %p56
      %s59 = sadd.s32 %s58, 1
      %p62 = scmp.eq.s32.totalorder %s12, 3
      %p63 = scmp.ne.s32.totalorder %s58, %s60
      %p64 = scmp.eq.s32.totalorder %s12, 0
      %p65 = por %p63, %p64
      %p66 = scmp.ne.s32.totalorder %s58, %s60
      %p67 = scmp.eq.s32.totalorder %s17, 3
      %p68 = por %p66, %p67
      %p69 = scmp.ne.s32.totalorder %s60, %s61
      %p70 = scmp.eq.s32.totalorder %s17, 0
      %p71 = por %p69, %p70
      %p72 = scmp.ne.s32.totalorder %s60, %s61
      %p73 = scmp.eq.s32.totalorder %s18, 3
      %p74 = por %p72, %p73
      %p76 = scmp.ne.s32.totalorder %s61, %s75
      %p77 = scmp.eq.s32.totalorder %s18, 0
      %p78 = por %p76, %p77
      %s80 = sadd.s32 %s79, 1
      %p83 = scmp.eq.s32.totalorder %s12, 3
      %p84 = scmp.ne.s32.totalorder %s79, %s81
      %p85 = scmp.eq.s32.totalorder %s12, 0
      %p86 = por %p84, %p85
      %p87 = scmp.ne.s32.totalorder %s79, %s81
      %p88 = scmp.eq.s32.totalorder %s17, 3
      %p89 = por %p87, %p88
      %p90 = scmp.ne.s32.totalorder %s81, %s82
      %p91 = scmp.eq.s32.totalorder %s17, 0
      %p92 = por %p90, %p91
      %p93 = scmp.ne.s32.totalorder %s81, %s82
      %p94 = scmp.eq.s32.totalorder %s18, 3
      %p95 = por %p93, %p94
      %p97 = scmp.ne.s32.totalorder %s82, %s96
      %p98 = scmp.eq.s32.totalorder %s18, 0
      %p99 = por %p97, %p98
      %s100 = ssub.s32 %s19, %s31
      %s101 = ssub.s32 %s20, %s27
      %s102 = sor.u32 %s100, %s101
      %p103 = scmp.eq.s32.totalorder %s102, 0
      %s105 = sadd.s32 %s104, 1
      %s106 = scalar_select %p103, %s104, %s105
      %p109 = pneg %p103
      %p110 = scmp.eq.s32.totalorder %s12, 3
      %p111 = por %p109, %p110
      %p112 = scmp.ne.s32.totalorder %s104, %s107
      %p113 = scmp.eq.s32.totalorder %s12, 0
      %p114 = por %p112, %p113
      %p115 = scmp.ne.s32.totalorder %s104, %s107
      %p116 = scmp.eq.s32.totalorder %s17, 3
      %p117 = por %p115, %p116
      %p118 = scmp.ne.s32.totalorder %s107, %s108
      %p119 = scmp.eq.s32.totalorder %s17, 0
      %p120 = por %p118, %p119
      %p121 = scmp.ne.s32.totalorder %s107, %s108
      %p122 = scmp.eq.s32.totalorder %s18, 3
      %p123 = por %p121, %p122
      %p125 = scmp.ne.s32.totalorder %s108, %s124
      %p126 = scmp.eq.s32.totalorder %s18, 0
      %p127 = por %p125, %p126
      %p128 = scmp.le.s32.totalorder 1, %s12
      %p129 = scmp.lt.s32.totalorder %s12, 5
      %p130 = pnand %p128, %p129
      %p131 = pneg %p130
      // Predicated region
      $region9: #{tpu_custom_call.1} parent=5 // pred_check
        _
      $region10: #{tpu_custom_call.1} parent=5 // pred_check_branch
        %133 = sbr.rel (%p130) target = $region12
      $region11: #{tpu_custom_call.1} parent=5 // pred_region
        %s134 = ssub.s32 %s12, 1
        // Predicated region
        $region13: #{tpu_custom_call.1} parent=11 // pred_check
          %p135 = pneg %p71
        $region14: #{tpu_custom_call.1} parent=11 // pred_check_branch
          %137 = sbr.rel (%p135) target = $region16
        $region15: #{tpu_custom_call.1} parent=11 // pred_region
          _
        $region16: #{tpu_custom_call.1} parent=11 // pred_fallthru
          _
        // Predicated region
        $region17: #{tpu_custom_call.1} parent=11 // pred_check
          %p138 = pneg %p92
        $region18: #{tpu_custom_call.1} parent=11 // pred_check_branch
          %140 = sbr.rel (%p138) target = $region20
        $region19: #{tpu_custom_call.1} parent=11 // pred_region
          _
        $region20: #{tpu_custom_call.1} parent=11 // pred_fallthru
          _
      $region12: #{tpu_custom_call.1} parent=5 // pred_fallthru
        _
      %p141 = scmp.lt.s32.totalorder %s12, 4
      // Predicated region
      $region21: #{tpu_custom_call.1} parent=5 // pred_check
        %p142 = pneg %p141
      $region22: #{tpu_custom_call.1} parent=5 // pred_check_branch
        %144 = sbr.rel (%p142) target = $region24
      $region23: #{tpu_custom_call.1} parent=5 // pred_region
        // Predicated region
        $region25: #{tpu_custom_call.1} parent=23 // pred_check
          %p145 = pneg %p44
        $region26: #{tpu_custom_call.1} parent=23 // pred_check_branch
          %147 = sbr.rel (%p145) target = $region28
        $region27: #{tpu_custom_call.1} parent=23 // pred_region
          %p148 = scmp.lt.s32.totalorder %s19, 1
          %s149 = scalar_select %p148, %s19, 1
          %s150 = smul.addr %s149, 2
          %s151 = smul.addr %s150, 4
          %s152 = scalar_lea.vmem %s0, %s151
        $region28: #{tpu_custom_call.1} parent=23 // pred_fallthru
          _
      $region24: #{tpu_custom_call.1} parent=5 // pred_fallthru
        _
      %p153 = scmp.le.s32.totalorder 1, %s12
      %p154 = scmp.lt.s32.totalorder %s12, 5
      %p155 = pnand %p153, %p154
      %p156 = pneg %p155
      // Predicated region
      $region29: #{tpu_custom_call.1} parent=5 // pred_check
        _
      $region30: #{tpu_custom_call.1} parent=5 // pred_check_branch
        %158 = sbr.rel (%p155) target = $region32
      $region31: #{tpu_custom_call.1} parent=5 // pred_region
        %s159 = ssub.s32 %s12, 1
        %p160 = scmp.lt.s32.totalorder %s21, 1
        %s161 = scalar_select %p160, %s21, 1
        %s162 = smul.addr %s161, 2
        %s163 = smul.addr %s162, 4
        %s164 = scalar_lea.vmem %s0, %s163
        %p165 = pneg %p50
        %p166 = pneg %p47
        %p167 = pneg %p71
        %p168 = pneg %p68
        %p169 = pneg %p92
        %p170 = pneg %p89
        %p171 = pneg %p120
        %p172 = pneg %p117
        %s173 = sand.u32 %s107, 1
        %s174 = scalar_lea.sflag [#allocation6], %s173
        %s175 = sand.u32 %s107, 1
        %s176 = smul.addr %s175, 8
        %s177 = scalar_lea.vmem [#allocation5], %s176
        %p178 = scmp.lt.s32.totalorder %s21, 1
        %s179 = scalar_select %p178, %s21, 1
        %s180 = smul.addr %s179, 2
        %s181 = smul.addr %s180, 4
        %s182 = scalar_lea.vmem %s0, %s181
        %p183 = scmp.eq.s32.totalorder %s22, 0
        // Predicated region
        $region33: #{tpu_custom_call.1} parent=31 // pred_check
          %p184 = pneg %p183
        $region34: #{tpu_custom_call.1} parent=31 // pred_check_branch
          %186 = sbr.rel (%p184) target = $region36
        $region35: #{tpu_custom_call.1} parent=31 // pred_region
          %v187 = vld [vmem:[%s182] sm:$0xff]
          %v188 = vmul.f32 %v187, %v187
          %v190 = vcombine.high %v188, %v188
          %vm192 = vcmask 1043456
          %v193 = vsel %vm192, %v188, 0.0
          %v194 = vrot.slane %v193, 4
          %v195 = vadd.f32 %v193, %v194
          %v196 = vrot.slane %v195, 2
          %v197 = vadd.f32 %v195, %v196
          %v198 = vrot.slane %v197, 1
          %v199 = vadd.f32 %v197, %v198
          %v200 = vsel %vm192, %v190, 0.0
          %v201 = vrot.slane %v200, 4
          %v202 = vadd.f32 %v200, %v201
          %v203 = vrot.slane %v202, 2
          %v204 = vadd.f32 %v202, %v203
          %v205 = vrot.slane %v204, 1
          %v206 = vadd.f32 %v204, %v205
          %v207 = vadd.f32 %v199, 1e-24
          %v208 = vadd.f32 %v206, 1e-24
          %v209 = vrsqrt.pop %v207
          %v210 = vrsqrt.pop %v208
          %v213 = vcombine.low %v209, %v210
          %v215 = vmul.f32 %v187, %v213
          %216 = vst [vmem:[#allocation2] sm:$0xff] %v215
          %v217 = vld [vmem:[%s1] sm:$0xff]
          %v219 = vcombine.high %v187, %v187
          %vm220 = vcmask 31744
          %v222 = vsel %vm220, %v217, 0
          %v224 = vsel %vm192, %v187, 0
          %v226 = vsel %vm192, %v219, 0
          %228 = vmatprep.subr.mxu0 %v226
          %229 = vmatpush1.msra.mxu0 %v224
          %230 = vmatprep.subr.mxu0 0.0
          %231 = vmatpush1.msra.mxu0 0.0
          %232 = vmatprep.subr.mxu0 0.0
          %233 = vmatpush1.msra.mxu0 0.0
          %234 = vmatprep.subr.mxu0 0.0
          %235 = vmatpush1.msra.mxu0 0.0
          %236 = vmatprep.subr.mxu0 0.0
          %237 = vmatpush1.msra.mxu0 0.0
          %238 = vmatprep.subr.mxu0 0.0
          %239 = vmatpush1.msra.mxu0 0.0
          %240 = vmatprep.subr.mxu0 0.0
          %241 = vmatpush1.msra.mxu0 0.0
          %242 = vmatprep.subr.mxu0 0.0
          %243 = vmatpush1.msra.mxu0 0.0
          %244 = vmatprep.subr.mxu0 0.0
          %245 = vmatpush1.msra.mxu0 0.0
          %246 = vmatprep.subr.mxu0 0.0
          %247 = vmatpush1.msra.mxu0 0.0
          %248 = vmatprep.subr.mxu0 0.0
          %249 = vmatpush1.msra.mxu0 0.0
          %250 = vmatprep.subr.mxu0 0.0
          %251 = vmatpush1.msra.mxu0 0.0
          %252 = vmatprep.subr.mxu0 0.0
          %253 = vmatpush1.msra.mxu0 0.0
          %254 = vmatprep.subr.mxu0 0.0
          %255 = vmatpush1.msra.mxu0 0.0
          %256 = vmatprep.subr.mxu0 0.0
          %257 = vmatpush1.msra.mxu0 0.0
          %258 = vmatprep.subr.mxu0 0.0
          %259 = vmatpush1.msra.mxu0 0.0
          %260 = vmatprep.subr.mxu0 0.0
          %261 = vmatpush1.msra.mxu0 0.0
          %262 = vmatprep.subr.mxu0 0.0
          %263 = vmatpush1.msra.mxu0 0.0
          %264 = vmatprep.subr.mxu0 0.0
          %265 = vmatpush1.msra.mxu0 0.0
          %266 = vmatprep.subr.mxu0 0.0
          %267 = vmatpush1.msra.mxu0 0.0
          %268 = vmatprep.subr.mxu0 0.0
          %269 = vmatpush1.msra.mxu0 0.0
          %270 = vmatprep.subr.mxu0 0.0
          %271 = vmatpush1.msra.mxu0 0.0
          %272 = vmatprep.subr.mxu0 0.0
          %273 = vmatpush1.msra.mxu0 0.0
          %274 = vmatprep.subr.mxu0 0.0
          %275 = vmatpush1.msra.mxu0 0.0
          %276 = vmatprep.subr.mxu0 0.0
          %277 = vmatpush1.msra.mxu0 0.0
          %278 = vmatprep.subr.mxu0 0.0
          %279 = vmatpush1.msra.mxu0 0.0
          %280 = vmatprep.subr.mxu0 0.0
          %281 = vmatpush1.msra.mxu0 0.0
          %282 = vmatprep.subr.mxu0 0.0
          %283 = vmatpush1.msra.mxu0 0.0
          %284 = vmatprep.subr.mxu0 0.0
          %285 = vmatpush1.msra.mxu0 0.0
          %286 = vmatprep.subr.mxu0 0.0
          %287 = vmatpush1.msra.mxu0 0.0
          %288 = vmatprep.subr.mxu0 0.0
          %289 = vmatpush1.msra.mxu0 0.0
          %290 = vmatprep.subr.mxu0 0.0
          %291 = vmatpush1.msra.mxu0 0.0
          %292 = vmatprep.mubr.f32.mxu0 0.0
          %293 = vmatmul.mubr.f32.gmra.mrb[0].mxu0 %v222
          %v294 = vpop.f32.mrb[0].mxu0
          %v295 = vadd.f32 0.0, %v294
          %v296 = vpop.f32.mrb[0].mxu0
          %v297 = vadd.f32 0.0, %v296
          %298 = vdwg.mxu0
          %299 = vst [vmem:[#allocation3] sm:$0xff] %v295
          %300 = vst [vmem:[#allocation3 + $0x8] sm:$0xff] %v297
          %s301 = scalar_lea.vmem %s1, 8
          %v302 = vld [vmem:[%s301] sm:$0xff]
          %v304 = vsel %vm220, %v302, 0
          %306 = vmatprep.subr.mxu0 %v226
          %307 = vmatpush1.msra.mxu0 %v224
          %308 = vmatprep.subr.mxu0 0.0
          %309 = vmatpush1.msra.mxu0 0.0
          %310 = vmatprep.subr.mxu0 0.0
          %311 = vmatpush1.msra.mxu0 0.0
          %312 = vmatprep.subr.mxu0 0.0
          %313 = vmatpush1.msra.mxu0 0.0
          %314 = vmatprep.subr.mxu0 0.0
          %315 = vmatpush1.msra.mxu0 0.0
          %316 = vmatprep.subr.mxu0 0.0
          %317 = vmatpush1.msra.mxu0 0.0
          %318 = vmatprep.subr.mxu0 0.0
          %319 = vmatpush1.msra.mxu0 0.0
          %320 = vmatprep.subr.mxu0 0.0
          %321 = vmatpush1.msra.mxu0 0.0
          %322 = vmatprep.subr.mxu0 0.0
          %323 = vmatpush1.msra.mxu0 0.0
          %324 = vmatprep.subr.mxu0 0.0
          %325 = vmatpush1.msra.mxu0 0.0
          %326 = vmatprep.subr.mxu0 0.0
          %327 = vmatpush1.msra.mxu0 0.0
          %328 = vmatprep.subr.mxu0 0.0
          %329 = vmatpush1.msra.mxu0 0.0
          %330 = vmatprep.subr.mxu0 0.0
          %331 = vmatpush1.msra.mxu0 0.0
          %332 = vmatprep.subr.mxu0 0.0
          %333 = vmatpush1.msra.mxu0 0.0
          %334 = vmatprep.subr.mxu0 0.0
          %335 = vmatpush1.msra.mxu0 0.0
          %336 = vmatprep.subr.mxu0 0.0
          %337 = vmatpush1.msra.mxu0 0.0
          %338 = vmatprep.subr.mxu0 0.0
          %339 = vmatpush1.msra.mxu0 0.0
          %340 = vmatprep.subr.mxu0 0.0
          %341 = vmatpush1.msra.mxu0 0.0
          %342 = vmatprep.subr.mxu0 0.0
          %343 = vmatpush1.msra.mxu0 0.0
          %344 = vmatprep.subr.mxu0 0.0
          %345 = vmatpush1.msra.mxu0 0.0
          %346 = vmatprep.subr.mxu0 0.0
          %347 = vmatpush1.msra.mxu0 0.0
          %348 = vmatprep.subr.mxu0 0.0
          %349 = vmatpush1.msra.mxu0 0.0
          %350 = vmatprep.subr.mxu0 0.0
          %351 = vmatpush1.msra.mxu0 0.0
          %352 = vmatprep.subr.mxu0 0.0
          %353 = vmatpush1.msra.mxu0 0.0
          %354 = vmatprep.subr.mxu0 0.0
          %355 = vmatpush1.msra.mxu0 0.0
          %356 = vmatprep.subr.mxu0 0.0
          %357 = vmatpush1.msra.mxu0 0.0
          %358 = vmatprep.subr.mxu0 0.0
          %359 = vmatpush1.msra.mxu0 0.0
          %360 = vmatprep.subr.mxu0 0.0
          %361 = vmatpush1.msra.mxu0 0.0
          %362 = vmatprep.subr.mxu0 0.0
          %363 = vmatpush1.msra.mxu0 0.0
          %364 = vmatprep.subr.mxu0 0.0
          %365 = vmatpush1.msra.mxu0 0.0
          %366 = vmatprep.subr.mxu0 0.0
          %367 = vmatpush1.msra.mxu0 0.0
          %368 = vmatprep.subr.mxu0 0.0
          %369 = vmatpush1.msra.mxu0 0.0
          %370 = vmatprep.mubr.f32.mxu0 0.0
          %371 = vmatmul.mubr.f32.gmra.mrb[0].mxu0 %v304
          %v372 = vpop.f32.mrb[0].mxu0
          %v373 = vadd.f32 0.0, %v372
          %v374 = vpop.f32.mrb[0].mxu0
          %v375 = vadd.f32 0.0, %v374
          %376 = vdwg.mxu0
          %377 = vst [vmem:[#allocation3 + $0x10] sm:$0xff] %v373
          %378 = vst [vmem:[#allocation3 + $0x18] sm:$0xff] %v375
          %s379 = scalar_lea.vmem %s1, 16
          %v380 = vld [vmem:[%s379] sm:$0xff]
          %v382 = vsel %vm220, %v380, 0
          %384 = vmatprep.subr.mxu0 %v226
          %385 = vmatpush1.msra.mxu0 %v224
          %386 = vmatprep.subr.mxu0 0.0
          %387 = vmatpush1.msra.mxu0 0.0
          %388 = vmatprep.subr.mxu0 0.0
          %389 = vmatpush1.msra.mxu0 0.0
          %390 = vmatprep.subr.mxu0 0.0
          %391 = vmatpush1.msra.mxu0 0.0
          %392 = vmatprep.subr.mxu0 0.0
          %393 = vmatpush1.msra.mxu0 0.0
          %394 = vmatprep.subr.mxu0 0.0
          %395 = vmatpush1.msra.mxu0 0.0
          %396 = vmatprep.subr.mxu0 0.0
          %397 = vmatpush1.msra.mxu0 0.0
          %398 = vmatprep.subr.mxu0 0.0
          %399 = vmatpush1.msra.mxu0 0.0
          %400 = vmatprep.subr.mxu0 0.0
          %401 = vmatpush1.msra.mxu0 0.0
          %402 = vmatprep.subr.mxu0 0.0
          %403 = vmatpush1.msra.mxu0 0.0
          %404 = vmatprep.subr.mxu0 0.0
          %405 = vmatpush1.msra.mxu0 0.0
          %406 = vmatprep.subr.mxu0 0.0
          %407 = vmatpush1.msra.mxu0 0.0
          %408 = vmatprep.subr.mxu0 0.0
          %409 = vmatpush1.msra.mxu0 0.0
          %410 = vmatprep.subr.mxu0 0.0
          %411 = vmatpush1.msra.mxu0 0.0
          %412 = vmatprep.subr.mxu0 0.0
          %413 = vmatpush1.msra.mxu0 0.0
          %414 = vmatprep.subr.mxu0 0.0
          %415 = vmatpush1.msra.mxu0 0.0
          %416 = vmatprep.subr.mxu0 0.0
          %417 = vmatpush1.msra.mxu0 0.0
          %418 = vmatprep.subr.mxu0 0.0
          %419 = vmatpush1.msra.mxu0 0.0
          %420 = vmatprep.subr.mxu0 0.0
          %421 = vmatpush1.msra.mxu0 0.0
          %422 = vmatprep.subr.mxu0 0.0
          %423 = vmatpush1.msra.mxu0 0.0
          %424 = vmatprep.subr.mxu0 0.0
          %425 = vmatpush1.msra.mxu0 0.0
          %426 = vmatprep.subr.mxu0 0.0
          %427 = vmatpush1.msra.mxu0 0.0
          %428 = vmatprep.subr.mxu0 0.0
          %429 = vmatpush1.msra.mxu0 0.0
          %430 = vmatprep.subr.mxu0 0.0
          %431 = vmatpush1.msra.mxu0 0.0
          %432 = vmatprep.subr.mxu0 0.0
          %433 = vmatpush1.msra.mxu0 0.0
          %434 = vmatprep.subr.mxu0 0.0
          %435 = vmatpush1.msra.mxu0 0.0
          %436 = vmatprep.subr.mxu0 0.0
          %437 = vmatpush1.msra.mxu0 0.0
          %438 = vmatprep.subr.mxu0 0.0
          %439 = vmatpush1.msra.mxu0 0.0
          %440 = vmatprep.subr.mxu0 0.0
          %441 = vmatpush1.msra.mxu0 0.0
          %442 = vmatprep.subr.mxu0 0.0
          %443 = vmatpush1.msra.mxu0 0.0
          %444 = vmatprep.subr.mxu0 0.0
          %445 = vmatpush1.msra.mxu0 0.0
          %446 = vmatprep.subr.mxu0 0.0
          %447 = vmatpush1.msra.mxu0 0.0
          %448 = vmatprep.mubr.f32.mxu0 0.0
          %449 = vmatmul.mubr.f32.gmra.mrb[0].mxu0 %v382
          %v450 = vpop.f32.mrb[0].mxu0
          %v451 = vadd.f32 0.0, %v450
          %v452 = vpop.f32.mrb[0].mxu0
          %v453 = vadd.f32 0.0, %v452
          %454 = vdwg.mxu0
          %455 = vst [vmem:[#allocation3 + $0x20] sm:$0xff] %v451
          %456 = vst [vmem:[#allocation3 + $0x28] sm:$0xff] %v453
        $region36: #{tpu_custom_call.1} parent=31 // pred_fallthru
          _
        %v457 = vld [vmem:[#allocation2] sm:$0xff]
        %s458 = smul.u32 %s22, 128
        %s459 = sshra.s32 %s458, 7
        %s460 = sand.u32 %s458, 127
        %s461 = smul.addr %s459, 4
        %s462 = scalar_lea.vmem [#allocation2], %s461
        %v463 = vld [vmem:[%s462] sm:$0xf]
        %v465 = vcombine.high %v457, %v457
        %467 = vxpose.xlu0.b32.start [1/16] %v457, 128
        %468 = vxpose.xlu0.b32.cont [2/16] 0.0, 128
        %469 = vxpose.xlu0.b32.cont [3/16] 0.0, 128
        %470 = vxpose.xlu0.b32.cont [4/16] 0.0, 128
        %471 = vxpose.xlu0.b32.cont [5/16] 0.0, 128
        %472 = vxpose.xlu0.b32.cont [6/16] 0.0, 128
        %473 = vxpose.xlu0.b32.cont [7/16] 0.0, 128
        %474 = vxpose.xlu0.b32.cont [8/16] 0.0, 128
        %475 = vxpose.xlu0.b32.cont [9/16] 0.0, 128
        %476 = vxpose.xlu0.b32.cont [10/16] 0.0, 128
        %477 = vxpose.xlu0.b32.cont [11/16] 0.0, 128
        %478 = vxpose.xlu0.b32.cont [12/16] 0.0, 128
        %479 = vxpose.xlu0.b32.cont [13/16] 0.0, 128
        %480 = vxpose.xlu0.b32.cont [14/16] 0.0, 128
        %481 = vxpose.xlu0.b32.cont [15/16] 0.0, 128
        %482 = vxpose.xlu0.b32.end [16/16] 0.0, 128
        %v483 = vpop.trf.xlu0
        %v484 = vpop.trf.xlu0
        %v485 = vpop.trf.xlu0
        %v486 = vpop.trf.xlu0
        %v487 = vpop.trf.xlu0
        %v488 = vpop.trf.xlu0
        %v489 = vpop.trf.xlu0
        %v490 = vpop.trf.xlu0
        %v491 = vpop.trf.xlu0
        %v492 = vpop.trf.xlu0
        %v493 = vpop.trf.xlu0
        %v494 = vpop.trf.xlu0
        %v495 = vpop.trf.xlu0
        %v496 = vpop.trf.xlu0
        %v497 = vpop.trf.xlu0
        %v498 = vpop.trf.xlu0
        %499 = vxpose.xlu0.b32.start [1/16] %v465, 128
        %500 = vxpose.xlu0.b32.cont [2/16] 0.0, 128
        %501 = vxpose.xlu0.b32.cont [3/16] 0.0, 128
        %502 = vxpose.xlu0.b32.cont [4/16] 0.0, 128
        %503 = vxpose.xlu0.b32.cont [5/16] 0.0, 128
        %504 = vxpose.xlu0.b32.cont [6/16] 0.0, 128
        %505 = vxpose.xlu0.b32.cont [7/16] 0.0, 128
        %506 = vxpose.xlu0.b32.cont [8/16] 0.0, 128
        %507 = vxpose.xlu0.b32.cont [9/16] 0.0, 128
        %508 = vxpose.xlu0.b32.cont [10/16] 0.0, 128
        %509 = vxpose.xlu0.b32.cont [11/16] 0.0, 128
        %510 = vxpose.xlu0.b32.cont [12/16] 0.0, 128
        %511 = vxpose.xlu0.b32.cont [13/16] 0.0, 128
        %512 = vxpose.xlu0.b32.cont [14/16] 0.0, 128
        %513 = vxpose.xlu0.b32.cont [15/16] 0.0, 128
        %514 = vxpose.xlu0.b32.end [16/16] 0.0, 128
        %v515 = vpop.trf.xlu0
        %v516 = vpop.trf.xlu0
        %v517 = vpop.trf.xlu0
        %v518 = vpop.trf.xlu0
        %v519 = vpop.trf.xlu0
        %v520 = vpop.trf.xlu0
        %v521 = vpop.trf.xlu0
        %v522 = vpop.trf.xlu0
        %v523 = vpop.trf.xlu0
        %v524 = vpop.trf.xlu0
        %v525 = vpop.trf.xlu0
        %v526 = vpop.trf.xlu0
        %v527 = vpop.trf.xlu0
        %v528 = vpop.trf.xlu0
        %v529 = vpop.trf.xlu0
        %v530 = vpop.trf.xlu0
        %vm531 = vcmask 31744
        %v533 = vsel %vm531, %v483, 0
        %v536 = vsel %vm531, %v484, 0
        %v539 = vsel %vm531, %v485, 0
        %v542 = vsel %vm531, %v486, 0
        %v545 = vsel %vm531, %v487, 0
        %v548 = vsel %vm531, %v488, 0
        %v551 = vsel %vm531, %v489, 0
        %v554 = vsel %vm531, %v490, 0
        %v557 = vsel %vm531, %v491, 0
        %v560 = vsel %vm531, %v492, 0
        %v563 = vsel %vm531, %v493, 0
        %v566 = vsel %vm531, %v494, 0
        %v569 = vsel %vm531, %v495, 0
        %v572 = vsel %vm531, %v496, 0
        %v575 = vsel %vm531, %v497, 0
        %v578 = vsel %vm531, %v498, 0
        %v581 = vsel %vm531, %v515, 0
        %v584 = vsel %vm531, %v516, 0
        %v587 = vsel %vm531, %v517, 0
        %v590 = vsel %vm531, %v518, 0
        %v593 = vsel %vm531, %v519, 0
        %v596 = vsel %vm531, %v520, 0
        %v599 = vsel %vm531, %v521, 0
        %v602 = vsel %vm531, %v522, 0
        %v605 = vsel %vm531, %v523, 0
        %v608 = vsel %vm531, %v524, 0
        %v611 = vsel %vm531, %v525, 0
        %v614 = vsel %vm531, %v526, 0
        %v617 = vsel %vm531, %v527, 0
        %v620 = vsel %vm531, %v528, 0
        %v623 = vsel %vm531, %v529, 0
        %v626 = vsel %vm531, %v530, 0
        %vm628 = vcmask 1043456
        %v630 = vsel %vm628, %v463, 0
        %632 = vmatprep.subr.mxu0 0.0
        %633 = vmatpush1.msra.mxu0 %v630
        %634 = vmatprep.subr.mxu0 0.0
        %635 = vmatpush1.msra.mxu0 0.0
        %636 = vmatprep.subr.mxu0 0.0
        %637 = vmatpush1.msra.mxu0 0.0
        %638 = vmatprep.subr.mxu0 0.0
        %639 = vmatpush1.msra.mxu0 0.0
        %640 = vmatprep.subr.mxu0 0.0
        %641 = vmatpush1.msra.mxu0 0.0
        %642 = vmatprep.subr.mxu0 0.0
        %643 = vmatpush1.msra.mxu0 0.0
        %644 = vmatprep.subr.mxu0 0.0
        %645 = vmatpush1.msra.mxu0 0.0
        %646 = vmatprep.subr.mxu0 0.0
        %647 = vmatpush1.msra.mxu0 0.0
        %648 = vmatprep.subr.mxu0 0.0
        %649 = vmatpush1.msra.mxu0 0.0
        %650 = vmatprep.subr.mxu0 0.0
        %651 = vmatpush1.msra.mxu0 0.0
        %652 = vmatprep.subr.mxu0 0.0
        %653 = vmatpush1.msra.mxu0 0.0
        %654 = vmatprep.subr.mxu0 0.0
        %655 = vmatpush1.msra.mxu0 0.0
        %656 = vmatprep.subr.mxu0 0.0
        %657 = vmatpush1.msra.mxu0 0.0
        %658 = vmatprep.subr.mxu0 0.0
        %659 = vmatpush1.msra.mxu0 0.0
        %660 = vmatprep.subr.mxu0 0.0
        %661 = vmatpush1.msra.mxu0 0.0
        %662 = vmatprep.subr.mxu0 0.0
        %663 = vmatpush1.msra.mxu0 0.0
        %664 = vmatprep.subr.mxu0 0.0
        %665 = vmatpush1.msra.mxu0 0.0
        %666 = vmatprep.subr.mxu0 0.0
        %667 = vmatpush1.msra.mxu0 0.0
        %668 = vmatprep.subr.mxu0 0.0
        %669 = vmatpush1.msra.mxu0 0.0
        %670 = vmatprep.subr.mxu0 0.0
        %671 = vmatpush1.msra.mxu0 0.0
        %672 = vmatprep.subr.mxu0 0.0
        %673 = vmatpush1.msra.mxu0 0.0
        %674 = vmatprep.subr.mxu0 0.0
        %675 = vmatpush1.msra.mxu0 0.0
        %676 = vmatprep.subr.mxu0 0.0
        %677 = vmatpush1.msra.mxu0 0.0
        %678 = vmatprep.subr.mxu0 0.0
        %679 = vmatpush1.msra.mxu0 0.0
        %680 = vmatprep.subr.mxu0 0.0
        %681 = vmatpush1.msra.mxu0 0.0
        %682 = vmatprep.subr.mxu0 0.0
        %683 = vmatpush1.msra.mxu0 0.0
        %684 = vmatprep.subr.mxu0 0.0
        %685 = vmatpush1.msra.mxu0 0.0
        %686 = vmatprep.subr.mxu0 0.0
        %687 = vmatpush1.msra.mxu0 0.0
        %688 = vmatprep.subr.mxu0 0.0
        %689 = vmatpush1.msra.mxu0 0.0
        %690 = vmatprep.subr.mxu0 0.0
        %691 = vmatpush1.msra.mxu0 0.0
        %692 = vmatprep.subr.mxu0 0.0
        %693 = vmatpush1.msra.mxu0 0.0
        %694 = vmatprep.subr.mxu0 0.0
        %695 = vmatpush1.msra.mxu0 0.0
        %696 = vmatprep.mubr.f32.mxu0 0.0
        %697 = vmatmul.mubr.f32.gmra.mrb[0].mxu0 %v533
        %v698 = vpop.f32.mrb[0].mxu0
        %v699 = vadd.f32 0.0, %v698
        %v700 = vpop.f32.mrb[0].mxu0
        %701 = vmatprep.mubr.f32.mxu0 0.0
        %702 = vmatmul.mubr.f32.gmra.mrb[0].mxu0 %v536
        %v703 = vpop.f32.mrb[0].mxu0
        %v704 = vadd.f32 0.0, %v703
        %v705 = vpop.f32.mrb[0].mxu0
        %706 = vmatprep.mubr.f32.mxu0 0.0
        %707 = vmatmul.mubr.f32.gmra.mrb[0].mxu0 %v539
        %v708 = vpop.f32.mrb[0].mxu0
        %v709 = vadd.f32 0.0, %v708
        %v710 = vpop.f32.mrb[0].mxu0
        %711 = vmatprep.mubr.f32.mxu0 0.0
        %712 = vmatmul.mubr.f32.gmra.mrb[0].mxu0 %v542
        %v713 = vpop.f32.mrb[0].mxu0
        %v714 = vadd.f32 0.0, %v713
        %v715 = vpop.f32.mrb[0].mxu0
        %716 = vmatprep.mubr.f32.mxu0 0.0
        %717 = vmatmul.mubr.f32.gmra.mrb[0].mxu0 %v545
        %v718 = vpop.f32.mrb[0].mxu0
        %v719 = vadd.f32 0.0, %v718
        %v720 = vpop.f32.mrb[0].mxu0
        %721 = vmatprep.mubr.f32.mxu0 0.0
        %722 = vmatmul.mubr.f32.gmra.mrb[0].mxu0 %v548
        %v723 = vpop.f32.mrb[0].mxu0
        %v724 = vadd.f32 0.0, %v723
        %v725 = vpop.f32.mrb[0].mxu0
        %726 = vmatprep.mubr.f32.mxu0 0.0
        %727 = vmatmul.mubr.f32.gmra.mrb[0].mxu0 %v551
        %v728 = vpop.f32.mrb[0].mxu0
        %v729 = vadd.f32 0.0, %v728
        %v730 = vpop.f32.mrb[0].mxu0
        %731 = vmatprep.mubr.f32.mxu0 0.0
        %732 = vmatmul.mubr.f32.gmra.mrb[0].mxu0 %v554
        %v733 = vpop.f32.mrb[0].mxu0
        %v734 = vadd.f32 0.0, %v733
        %v735 = vpop.f32.mrb[0].mxu0
        %736 = vmatprep.mubr.f32.mxu0 0.0
        %737 = vmatmul.mubr.f32.gmra.mrb[0].mxu0 %v557
        %v738 = vpop.f32.mrb[0].mxu0
        %v739 = vadd.f32 0.0, %v738
        %v740 = vpop.f32.mrb[0].mxu0
        %741 = vmatprep.mubr.f32.mxu0 0.0
        %742 = vmatmul.mubr.f32.gmra.mrb[0].mxu0 %v560
        %v743 = vpop.f32.mrb[0].mxu0
        %v744 = vadd.f32 0.0, %v743
        %v745 = vpop.f32.mrb[0].mxu0
        %746 = vmatprep.mubr.f32.mxu0 0.0
        %747 = vmatmul.mubr.f32.gmra.mrb[0].mxu0 %v563
        %v748 = vpop.f32.mrb[0].mxu0
        %v749 = vadd.f32 0.0, %v748
        %v750 = vpop.f32.mrb[0].mxu0
        %751 = vmatprep.mubr.f32.mxu0 0.0
        %752 = vmatmul.mubr.f32.gmra.mrb[0].mxu0 %v566
        %v753 = vpop.f32.mrb[0].mxu0
        %v754 = vadd.f32 0.0, %v753
        %v755 = vpop.f32.mrb[0].mxu0
        %756 = vmatprep.mubr.f32.mxu0 0.0
        %757 = vmatmul.mubr.f32.gmra.mrb[0].mxu0 %v569
        %v758 = vpop.f32.mrb[0].mxu0
        %v759 = vadd.f32 0.0, %v758
        %v760 = vpop.f32.mrb[0].mxu0
        %761 = vmatprep.mubr.f32.mxu0 0.0
        %762 = vmatmul.mubr.f32.gmra.mrb[0].mxu0 %v572
        %v763 = vpop.f32.mrb[0].mxu0
        %v764 = vadd.f32 0.0, %v763
        %v765 = vpop.f32.mrb[0].mxu0
        %766 = vmatprep.mubr.f32.mxu0 0.0
        %767 = vmatmul.mubr.f32.gmra.mrb[0].mxu0 %v575
        %v768 = vpop.f32.mrb[0].mxu0
        %v769 = vadd.f32 0.0, %v768
        %v770 = vpop.f32.mrb[0].mxu0
        %771 = vmatprep.mubr.f32.mxu0 0.0
        %772 = vmatmul.mubr.f32.gmra.mrb[0].mxu0 %v578
        %v773 = vpop.f32.mrb[0].mxu0
        %v774 = vadd.f32 0.0, %v773
        %v775 = vpop.f32.mrb[0].mxu0
        %776 = vmatprep.mubr.f32.mxu0 0.0
        %777 = vmatmul.mubr.f32.gmra.mrb[0].mxu0 %v581
        %v778 = vpop.f32.mrb[0].mxu0
        %v779 = vadd.f32 0.0, %v778
        %v780 = vpop.f32.mrb[0].mxu0
        %781 = vmatprep.mubr.f32.mxu0 0.0
        %782 = vmatmul.mubr.f32.gmra.mrb[0].mxu0 %v584
        %v783 = vpop.f32.mrb[0].mxu0
        %v784 = vadd.f32 0.0, %v783
        %v785 = vpop.f32.mrb[0].mxu0
        %786 = vmatprep.mubr.f32.mxu0 0.0
        %787 = vmatmul.mubr.f32.gmra.mrb[0].mxu0 %v587
        %v788 = vpop.f32.mrb[0].mxu0
        %v789 = vadd.f32 0.0, %v788
        %v790 = vpop.f32.mrb[0].mxu0
        %791 = vmatprep.mubr.f32.mxu0 0.0
        %792 = vmatmul.mubr.f32.gmra.mrb[0].mxu0 %v590
        %v793 = vpop.f32.mrb[0].mxu0
        %v794 = vadd.f32 0.0, %v793
        %v795 = vpop.f32.mrb[0].mxu0
        %796 = vmatprep.mubr.f32.mxu0 0.0
        %797 = vmatmul.mubr.f32.gmra.mrb[0].mxu0 %v593
        %v798 = vpop.f32.mrb[0].mxu0
        %v799 = vadd.f32 0.0, %v798
        %v800 = vpop.f32.mrb[0].mxu0
        %801 = vmatprep.mubr.f32.mxu0 0.0
        %802 = vmatmul.mubr.f32.gmra.mrb[0].mxu0 %v596
        %v803 = vpop.f32.mrb[0].mxu0
        %v804 = vadd.f32 0.0, %v803
        %v805 = vpop.f32.mrb[0].mxu0
        %806 = vmatprep.mubr.f32.mxu0 0.0
        %807 = vmatmul.mubr.f32.gmra.mrb[0].mxu0 %v599
        %v808 = vpop.f32.mrb[0].mxu0
        %v809 = vadd.f32 0.0, %v808
        %v810 = vpop.f32.mrb[0].mxu0
        %811 = vmatprep.mubr.f32.mxu0 0.0
        %812 = vmatmul.mubr.f32.gmra.mrb[0].mxu0 %v602
        %v813 = vpop.f32.mrb[0].mxu0
        %v814 = vadd.f32 0.0, %v813
        %v815 = vpop.f32.mrb[0].mxu0
        %816 = vmatprep.mubr.f32.mxu0 0.0
        %817 = vmatmul.mubr.f32.gmra.mrb[0].mxu0 %v605
        %v818 = vpop.f32.mrb[0].mxu0
        %v819 = vadd.f32 0.0, %v818
        %v820 = vpop.f32.mrb[0].mxu0
        %821 = vmatprep.mubr.f32.mxu0 0.0
        %822 = vmatmul.mubr.f32.gmra.mrb[0].mxu0 %v608
        %v823 = vpop.f32.mrb[0].mxu0
        %v824 = vadd.f32 0.0, %v823
        %v825 = vpop.f32.mrb[0].mxu0
        %826 = vmatprep.mubr.f32.mxu0 0.0
        %827 = vmatmul.mubr.f32.gmra.mrb[0].mxu0 %v611
        %v828 = vpop.f32.mrb[0].mxu0
        %v829 = vadd.f32 0.0, %v828
        %v830 = vpop.f32.mrb[0].mxu0
        %831 = vmatprep.mubr.f32.mxu0 0.0
        %832 = vmatmul.mubr.f32.gmra.mrb[0].mxu0 %v614
        %v833 = vpop.f32.mrb[0].mxu0
        %v834 = vadd.f32 0.0, %v833
        %v835 = vpop.f32.mrb[0].mxu0
        %836 = vmatprep.mubr.f32.mxu0 0.0
        %837 = vmatmul.mubr.f32.gmra.mrb[0].mxu0 %v617
        %v838 = vpop.f32.mrb[0].mxu0
        %v839 = vadd.f32 0.0, %v838
        %v840 = vpop.f32.mrb[0].mxu0
        %841 = vmatprep.mubr.f32.mxu0 0.0
        %842 = vmatmul.mubr.f32.gmra.mrb[0].mxu0 %v620
        %v843 = vpop.f32.mrb[0].mxu0
        %v844 = vadd.f32 0.0, %v843
        %v845 = vpop.f32.mrb[0].mxu0
        %846 = vmatprep.mubr.f32.mxu0 0.0
        %847 = vmatmul.mubr.f32.gmra.mrb[0].mxu0 %v623
        %v848 = vpop.f32.mrb[0].mxu0
        %v849 = vadd.f32 0.0, %v848
        %v850 = vpop.f32.mrb[0].mxu0
        %851 = vmatprep.mubr.f32.mxu0 0.0
        %852 = vmatmul.mubr.f32.gmra.mrb[0].mxu0 %v626
        %v853 = vpop.f32.mrb[0].mxu0
        %v854 = vadd.f32 0.0, %v853
        %v855 = vpop.f32.mrb[0].mxu0
        %856 = vdwg.mxu0
        %v857 = vlaneseq
        %v858 = vshrl.u32 %v857, 7
        %v859 = vadd.s32 %v858, 8
        %v860 = vadd.s32 %v858, 16
        %v861 = vadd.s32 %v858, 24
        %v862 = vadd.s32 %v858, 32
        %v863 = vadd.s32 %v858, 40
        %v864 = vadd.s32 %v858, 48
        %v865 = vadd.s32 %v858, 56
        %v866 = vadd.s32 %v858, 64
        %v867 = vadd.s32 %v858, 72
        %v868 = vadd.s32 %v858, 80
        %v869 = vadd.s32 %v858, 88
        %v870 = vadd.s32 %v858, 96
        %v871 = vadd.s32 %v858, 104
        %v872 = vadd.s32 %v858, 112
        %v873 = vadd.s32 %v858, 120
        %v874 = vadd.s32 %v858, 128
        %v875 = vadd.s32 %v858, 136
        %v876 = vadd.s32 %v858, 144
        %v877 = vadd.s32 %v858, 152
        %v878 = vadd.s32 %v858, 160
        %v879 = vadd.s32 %v858, 168
        %v880 = vadd.s32 %v858, 176
        %v881 = vadd.s32 %v858, 184
        %v882 = vadd.s32 %v858, 192
        %v883 = vadd.s32 %v858, 200
        %v884 = vadd.s32 %v858, 208
        %v885 = vadd.s32 %v858, 216
        %v886 = vadd.s32 %v858, 224
        %v887 = vadd.s32 %v858, 232
        %v888 = vadd.s32 %v858, 240
        %v889 = vadd.s32 %v858, 248
        %v890 = vmax.f32 %v699, %v719
        %v891 = vmax.f32 %v704, %v724
        %v892 = vmax.f32 %v709, %v729
        %v893 = vmax.f32 %v714, %v734
        %v894 = vmax.f32 %v890, %v739
        %v895 = vmax.f32 %v891, %v744
        %v896 = vmax.f32 %v892, %v749
        %v897 = vmax.f32 %v893, %v754
        %v898 = vmax.f32 %v894, %v759
        %v899 = vmax.f32 %v895, %v764
        %v900 = vmax.f32 %v896, %v769
        %v901 = vmax.f32 %v897, %v774
        %v902 = vmax.f32 %v898, %v779
        %v903 = vmax.f32 %v899, %v784
        %v904 = vmax.f32 %v900, %v789
        %v905 = vmax.f32 %v901, %v794
        %v906 = vmax.f32 %v902, %v799
        %v907 = vmax.f32 %v903, %v804
        %v908 = vmax.f32 %v904, %v809
        %v909 = vmax.f32 %v905, %v814
        %v910 = vmax.f32 %v906, %v819
        %v911 = vmax.f32 %v907, %v824
        %v912 = vmax.f32 %v908, %v829
        %v913 = vmax.f32 %v909, %v834
        %v914 = vmax.f32 %v910, %v839
        %v915 = vmax.f32 %v911, %v844
        %v916 = vmax.f32 %v912, %v849
        %v917 = vmax.f32 %v913, %v854
        %v918 = vmax.f32 %v914, %v915
        %v919 = vmax.f32 %v916, %v917
        %v920 = vmax.f32 %v918, %v919
        %v921 = vrot.slane %v920, 4
        %v922 = vmax.f32 %v920, %v921
        %v923 = vrot.slane %v922, 2
        %v924 = vmax.f32 %v922, %v923
        %v925 = vrot.slane %v924, 1
        %v926 = vmax.f32 %v924, %v925
        %vm927 = vcmp.eq.f32.partialorder %v699, %v926
        %vm928 = vcmp.eq.f32.partialorder %v704, %v926
        %vm929 = vcmp.eq.f32.partialorder %v709, %v926
        %vm930 = vcmp.eq.f32.partialorder %v714, %v926
        %vm931 = vcmp.eq.f32.partialorder %v719, %v926
        %vm932 = vcmp.eq.f32.partialorder %v724, %v926
        %vm933 = vcmp.eq.f32.partialorder %v729, %v926
        %vm934 = vcmp.eq.f32.partialorder %v734, %v926
        %vm935 = vcmp.eq.f32.partialorder %v739, %v926
        %vm936 = vcmp.eq.f32.partialorder %v744, %v926
        %vm937 = vcmp.eq.f32.partialorder %v749, %v926
        %vm938 = vcmp.eq.f32.partialorder %v754, %v926
        %vm939 = vcmp.eq.f32.partialorder %v759, %v926
        %vm940 = vcmp.eq.f32.partialorder %v764, %v926
        %vm941 = vcmp.eq.f32.partialorder %v769, %v926
        %vm942 = vcmp.eq.f32.partialorder %v774, %v926
        %vm943 = vcmp.eq.f32.partialorder %v779, %v926
        %vm944 = vcmp.eq.f32.partialorder %v784, %v926
        %vm945 = vcmp.eq.f32.partialorder %v789, %v926
        %vm946 = vcmp.eq.f32.partialorder %v794, %v926
        %vm947 = vcmp.eq.f32.partialorder %v799, %v926
        %vm948 = vcmp.eq.f32.partialorder %v804, %v926
        %vm949 = vcmp.eq.f32.partialorder %v809, %v926
        %vm950 = vcmp.eq.f32.partialorder %v814, %v926
        %vm951 = vcmp.eq.f32.partialorder %v819, %v926
        %vm952 = vcmp.eq.f32.partialorder %v824, %v926
        %vm953 = vcmp.eq.f32.partialorder %v829, %v926
        %vm954 = vcmp.eq.f32.partialorder %v834, %v926
        %vm955 = vcmp.eq.f32.partialorder %v839, %v926
        %vm956 = vcmp.eq.f32.partialorder %v844, %v926
        %vm957 = vcmp.eq.f32.partialorder %v849, %v926
        %vm958 = vcmp.eq.f32.partialorder %v854, %v926
        %v959 = vsel %vm927, %v858, 256
        %v960 = vsel %vm928, %v859, 256
        %v961 = vsel %vm929, %v860, 256
        %v962 = vsel %vm930, %v861, 256
        %v963 = vsel %vm931, %v862, 256
        %v964 = vsel %vm932, %v863, 256
        %v965 = vsel %vm933, %v864, 256
        %v966 = vsel %vm934, %v865, 256
        %v967 = vsel %vm935, %v866, 256
        %v968 = vsel %vm936, %v867, 256
        %v969 = vsel %vm937, %v868, 256
        %v970 = vsel %vm938, %v869, 256
        %v971 = vsel %vm939, %v870, 256
        %v972 = vsel %vm940, %v871, 256
        %v973 = vsel %vm941, %v872, 256
        %v974 = vsel %vm942, %v873, 256
        %v975 = vsel %vm943, %v874, 256
        %v976 = vsel %vm944, %v875, 256
        %v977 = vsel %vm945, %v876, 256
        %v978 = vsel %vm946, %v877, 256
        %v979 = vsel %vm947, %v878, 256
        %v980 = vsel %vm948, %v879, 256
        %v981 = vsel %vm949, %v880, 256
        %v982 = vsel %vm950, %v881, 256
        %v983 = vsel %vm951, %v882, 256
        %v984 = vsel %vm952, %v883, 256
        %v985 = vsel %vm953, %v884, 256
        %v986 = vsel %vm954, %v885, 256
        %v987 = vsel %vm955, %v886, 256
        %v988 = vsel %vm956, %v887, 256
        %v989 = vsel %vm957, %v888, 256
        %v990 = vsel %vm958, %v889, 256
        %vm991 = vcmp.lt.s32.totalorder %v959, %v963
        %v992 = vsel %vm991, %v959, %v963
        %vm993 = vcmp.lt.s32.totalorder %v960, %v964
        %v994 = vsel %vm993, %v960, %v964
        %vm995 = vcmp.lt.s32.totalorder %v961, %v965
        %v996 = vsel %vm995, %v961, %v965
        %vm997 = vcmp.lt.s32.totalorder %v962, %v966
        %v998 = vsel %vm997, %v962, %v966
        %vm999 = vcmp.lt.s32.totalorder %v992, %v967
        %v1000 = vsel %vm999, %v992, %v967
        %vm1001 = vcmp.lt.s32.totalorder %v994, %v968
        %v1002 = vsel %vm1001, %v994, %v968
        %vm1003 = vcmp.lt.s32.totalorder %v996, %v969
        %v1004 = vsel %vm1003, %v996, %v969
        %vm1005 = vcmp.lt.s32.totalorder %v998, %v970
        %v1006 = vsel %vm1005, %v998, %v970
        %vm1007 = vcmp.lt.s32.totalorder %v1000, %v971
        %v1008 = vsel %vm1007, %v1000, %v971
        %vm1009 = vcmp.lt.s32.totalorder %v1002, %v972
        %v1010 = vsel %vm1009, %v1002, %v972
        %vm1011 = vcmp.lt.s32.totalorder %v1004, %v973
        %v1012 = vsel %vm1011, %v1004, %v973
        %vm1013 = vcmp.lt.s32.totalorder %v1006, %v974
        %v1014 = vsel %vm1013, %v1006, %v974
        %vm1015 = vcmp.lt.s32.totalorder %v1008, %v975
        %v1016 = vsel %vm1015, %v1008, %v975
        %vm1017 = vcmp.lt.s32.totalorder %v1010, %v976
        %v1018 = vsel %vm1017, %v1010, %v976
        %vm1019 = vcmp.lt.s32.totalorder %v1012, %v977
        %v1020 = vsel %vm1019, %v1012, %v977
        %vm1021 = vcmp.lt.s32.totalorder %v1014, %v978
        %v1022 = vsel %vm1021, %v1014, %v978
        %vm1023 = vcmp.lt.s32.totalorder %v1016, %v979
        %v1024 = vsel %vm1023, %v1016, %v979
        %vm1025 = vcmp.lt.s32.totalorder %v1018, %v980
        %v1026 = vsel %vm1025, %v1018, %v980
        %vm1027 = vcmp.lt.s32.totalorder %v1020, %v981
        %v1028 = vsel %vm1027, %v1020, %v981
        %vm1029 = vcmp.lt.s32.totalorder %v1022, %v982
        %v1030 = vsel %vm1029, %v1022, %v982
        %vm1031 = vcmp.lt.s32.totalorder %v1024, %v983
        %v1032 = vsel %vm1031, %v1024, %v983
        %vm1033 = vcmp.lt.s32.totalorder %v1026, %v984
        %v1034 = vsel %vm1033, %v1026, %v984
        %vm1035 = vcmp.lt.s32.totalorder %v1028, %v985
        %v1036 = vsel %vm1035, %v1028, %v985
        %vm1037 = vcmp.lt.s32.totalorder %v1030, %v986
        %v1038 = vsel %vm1037, %v1030, %v986
        %vm1039 = vcmp.lt.s32.totalorder %v1032, %v987
        %v1040 = vsel %vm1039, %v1032, %v987
        %vm1041 = vcmp.lt.s32.totalorder %v1034, %v988
        %v1042 = vsel %vm1041, %v1034, %v988
        %vm1043 = vcmp.lt.s32.totalorder %v1036, %v989
        %v1044 = vsel %vm1043, %v1036, %v989
        %vm1045 = vcmp.lt.s32.totalorder %v1038, %v990
        %v1046 = vsel %vm1045, %v1038, %v990
        %vm1047 = vcmp.lt.s32.totalorder %v1040, %v1042
        %v1048 = vsel %vm1047, %v1040, %v1042
        %vm1049 = vcmp.lt.s32.totalorder %v1044, %v1046
        %v1050 = vsel %vm1049, %v1044, %v1046
        %vm1051 = vcmp.lt.s32.totalorder %v1048, %v1050
        %v1052 = vsel %vm1051, %v1048, %v1050
        %v1053 = vrot.slane %v1052, 4
        %vm1054 = vcmp.lt.s32.totalorder %v1052, %v1053
        %v1055 = vsel %vm1054, %v1052, %v1053
        %v1056 = vrot.slane %v1055, 2
        %vm1057 = vcmp.lt.s32.totalorder %v1055, %v1056
        %v1058 = vsel %vm1057, %v1055, %v1056
        %v1059 = vrot.slane %v1058, 1
        %vm1060 = vcmp.lt.s32.totalorder %v1058, %v1059
        %v1061 = vsel %vm1060, %v1058, %v1059
        %vm1062 = vcmp.eq.s32.totalorder %v858, %v1061
        %vm1063 = vcmp.eq.s32.totalorder %v859, %v1061
        %vm1064 = vcmp.eq.s32.totalorder %v860, %v1061
        %vm1065 = vcmp.eq.s32.totalorder %v861, %v1061
        %vm1066 = vcmp.eq.s32.totalorder %v862, %v1061
        %vm1067 = vcmp.eq.s32.totalorder %v863, %v1061
        %vm1068 = vcmp.eq.s32.totalorder %v864, %v1061
        %vm1069 = vcmp.eq.s32.totalorder %v865, %v1061
        %vm1070 = vcmp.eq.s32.totalorder %v866, %v1061
        %vm1071 = vcmp.eq.s32.totalorder %v867, %v1061
        %vm1072 = vcmp.eq.s32.totalorder %v868, %v1061
        %vm1073 = vcmp.eq.s32.totalorder %v869, %v1061
        %vm1074 = vcmp.eq.s32.totalorder %v870, %v1061
        %vm1075 = vcmp.eq.s32.totalorder %v871, %v1061
        %vm1076 = vcmp.eq.s32.totalorder %v872, %v1061
        %vm1077 = vcmp.eq.s32.totalorder %v873, %v1061
        %vm1078 = vcmp.eq.s32.totalorder %v874, %v1061
        %vm1079 = vcmp.eq.s32.totalorder %v875, %v1061
        %vm1080 = vcmp.eq.s32.totalorder %v876, %v1061
        %vm1081 = vcmp.eq.s32.totalorder %v877, %v1061
        %vm1082 = vcmp.eq.s32.totalorder %v878, %v1061
        %vm1083 = vcmp.eq.s32.totalorder %v879, %v1061
        %vm1084 = vcmp.eq.s32.totalorder %v880, %v1061
        %vm1085 = vcmp.eq.s32.totalorder %v881, %v1061
        %vm1086 = vcmp.eq.s32.totalorder %v882, %v1061
        %vm1087 = vcmp.eq.s32.totalorder %v883, %v1061
        %vm1088 = vcmp.eq.s32.totalorder %v884, %v1061
        %vm1089 = vcmp.eq.s32.totalorder %v885, %v1061
        %vm1090 = vcmp.eq.s32.totalorder %v886, %v1061
        %vm1091 = vcmp.eq.s32.totalorder %v887, %v1061
        %vm1092 = vcmp.eq.s32.totalorder %v888, %v1061
        %vm1093 = vcmp.eq.s32.totalorder %v889, %v1061
        %v1094 = vsel %vm1062, 1, 0
        %v1095 = vsel %vm1063, 1, 0
        %v1096 = vsel %vm1064, 1, 0
        %v1097 = vsel %vm1065, 1, 0
        %v1098 = vsel %vm1066, 1, 0
        %v1099 = vsel %vm1067, 1, 0
        %v1100 = vsel %vm1068, 1, 0
        %v1101 = vsel %vm1069, 1, 0
        %v1102 = vsel %vm1070, 1, 0
        %v1103 = vsel %vm1071, 1, 0
        %v1104 = vsel %vm1072, 1, 0
        %v1105 = vsel %vm1073, 1, 0
        %v1106 = vsel %vm1074, 1, 0
        %v1107 = vsel %vm1075, 1, 0
        %v1108 = vsel %vm1076, 1, 0
        %v1109 = vsel %vm1077, 1, 0
        %v1110 = vsel %vm1078, 1, 0
        %v1111 = vsel %vm1079, 1, 0
        %v1112 = vsel %vm1080, 1, 0
        %v1113 = vsel %vm1081, 1, 0
        %v1114 = vsel %vm1082, 1, 0
        %v1115 = vsel %vm1083, 1, 0
        %v1116 = vsel %vm1084, 1, 0
        %v1117 = vsel %vm1085, 1, 0
        %v1118 = vsel %vm1086, 1, 0
        %v1119 = vsel %vm1087, 1, 0
        %v1120 = vsel %vm1088, 1, 0
        %v1121 = vsel %vm1089, 1, 0
        %v1122 = vsel %vm1090, 1, 0
        %v1123 = vsel %vm1091, 1, 0
        %v1124 = vsel %vm1092, 1, 0
        %v1125 = vsel %vm1093, 1, 0
        %v1126 = vcvt.s32.f32 %v1094
        %v1127 = vcvt.s32.f32 %v1095
        %v1128 = vcvt.s32.f32 %v1096
        %v1129 = vcvt.s32.f32 %v1097
        %v1130 = vcvt.s32.f32 %v1098
        %v1131 = vcvt.s32.f32 %v1099
        %v1132 = vcvt.s32.f32 %v1100
        %v1133 = vcvt.s32.f32 %v1101
        %v1134 = vcvt.s32.f32 %v1102
        %v1135 = vcvt.s32.f32 %v1103
        %v1136 = vcvt.s32.f32 %v1104
        %v1137 = vcvt.s32.f32 %v1105
        %v1138 = vcvt.s32.f32 %v1106
        %v1139 = vcvt.s32.f32 %v1107
        %v1140 = vcvt.s32.f32 %v1108
        %v1141 = vcvt.s32.f32 %v1109
        %v1142 = vcvt.s32.f32 %v1110
        %v1143 = vcvt.s32.f32 %v1111
        %v1144 = vcvt.s32.f32 %v1112
        %v1145 = vcvt.s32.f32 %v1113
        %v1146 = vcvt.s32.f32 %v1114
        %v1147 = vcvt.s32.f32 %v1115
        %v1148 = vcvt.s32.f32 %v1116
        %v1149 = vcvt.s32.f32 %v1117
        %v1150 = vcvt.s32.f32 %v1118
        %v1151 = vcvt.s32.f32 %v1119
        %v1152 = vcvt.s32.f32 %v1120
        %v1153 = vcvt.s32.f32 %v1121
        %v1154 = vcvt.s32.f32 %v1122
        %v1155 = vcvt.s32.f32 %v1123
        %v1156 = vcvt.s32.f32 %v1124
        %v1157 = vcvt.s32.f32 %v1125
        %1158 = vst [vmem:[#allocation4] sm:$0xff] %v1126
        %1159 = vst [vmem:[#allocation4 + $0x8] sm:$0xff] %v1127
        %1160 = vst [vmem:[#allocation4 + $0x10] sm:$0xff] %v1128
        %1161 = vst [vmem:[#allocation4 + $0x18] sm:$0xff] %v1129
        %1162 = vst [vmem:[#allocation4 + $0x20] sm:$0xff] %v1130
        %1163 = vst [vmem:[#allocation4 + $0x28] sm:$0xff] %v1131
        %1164 = vst [vmem:[#allocation4 + $0x30] sm:$0xff] %v1132
        %1165 = vst [vmem:[#allocation4 + $0x38] sm:$0xff] %v1133
        %1166 = vst [vmem:[#allocation4 + $0x40] sm:$0xff] %v1134
        %1167 = vst [vmem:[#allocation4 + $0x48] sm:$0xff] %v1135
        %1168 = vst [vmem:[#allocation4 + $0x50] sm:$0xff] %v1136
        %1169 = vst [vmem:[#allocation4 + $0x58] sm:$0xff] %v1137
        %1170 = vst [vmem:[#allocation4 + $0x60] sm:$0xff] %v1138
        %1171 = vst [vmem:[#allocation4 + $0x68] sm:$0xff] %v1139
        %1172 = vst [vmem:[#allocation4 + $0x70] sm:$0xff] %v1140
        %1173 = vst [vmem:[#allocation4 + $0x78] sm:$0xff] %v1141
        %1174 = vst [vmem:[#allocation4 + $0x80] sm:$0xff] %v1142
        %1175 = vst [vmem:[#allocation4 + $0x88] sm:$0xff] %v1143
        %1176 = vst [vmem:[#allocation4 + $0x90] sm:$0xff] %v1144
        %1177 = vst [vmem:[#allocation4 + $0x98] sm:$0xff] %v1145
        %1178 = vst [vmem:[#allocation4 + $0xa0] sm:$0xff] %v1146
        %1179 = vst [vmem:[#allocation4 + $0xa8] sm:$0xff] %v1147
        %1180 = vst [vmem:[#allocation4 + $0xb0] sm:$0xff] %v1148
        %1181 = vst [vmem:[#allocation4 + $0xb8] sm:$0xff] %v1149
        %1182 = vst [vmem:[#allocation4 + $0xc0] sm:$0xff] %v1150
        %1183 = vst [vmem:[#allocation4 + $0xc8] sm:$0xff] %v1151
        %1184 = vst [vmem:[#allocation4 + $0xd0] sm:$0xff] %v1152
        %1185 = vst [vmem:[#allocation4 + $0xd8] sm:$0xff] %v1153
        %1186 = vst [vmem:[#allocation4 + $0xe0] sm:$0xff] %v1154
        %1187 = vst [vmem:[#allocation4 + $0xe8] sm:$0xff] %v1155
        %1188 = vst [vmem:[#allocation4 + $0xf0] sm:$0xff] %v1156
        %1189 = vst [vmem:[#allocation4 + $0xf8] sm:$0xff] %v1157
        %v1190 = vsel %vm1062, -1e+30, %v699
        %v1191 = vsel %vm1063, -1e+30, %v704
        %v1192 = vsel %vm1064, -1e+30, %v709
        %v1193 = vsel %vm1065, -1e+30, %v714
        %v1194 = vsel %vm1066, -1e+30, %v719
        %v1195 = vsel %vm1067, -1e+30, %v724
        %v1196 = vsel %vm1068, -1e+30, %v729
        %v1197 = vsel %vm1069, -1e+30, %v734
        %v1198 = vsel %vm1070, -1e+30, %v739
        %v1199 = vsel %vm1071, -1e+30, %v744
        %v1200 = vsel %vm1072, -1e+30, %v749
        %v1201 = vsel %vm1073, -1e+30, %v754
        %v1202 = vsel %vm1074, -1e+30, %v759
        %v1203 = vsel %vm1075, -1e+30, %v764
        %v1204 = vsel %vm1076, -1e+30, %v769
        %v1205 = vsel %vm1077, -1e+30, %v774
        %v1206 = vsel %vm1078, -1e+30, %v779
        %v1207 = vsel %vm1079, -1e+30, %v784
        %v1208 = vsel %vm1080, -1e+30, %v789
        %v1209 = vsel %vm1081, -1e+30, %v794
        %v1210 = vsel %vm1082, -1e+30, %v799
        %v1211 = vsel %vm1083, -1e+30, %v804
        %v1212 = vsel %vm1084, -1e+30, %v809
        %v1213 = vsel %vm1085, -1e+30, %v814
        %v1214 = vsel %vm1086, -1e+30, %v819
        %v1215 = vsel %vm1087, -1e+30, %v824
        %v1216 = vsel %vm1088, -1e+30, %v829
        %v1217 = vsel %vm1089, -1e+30, %v834
        %v1218 = vsel %vm1090, -1e+30, %v839
        %v1219 = vsel %vm1091, -1e+30, %v844
        %v1220 = vsel %vm1092, -1e+30, %v849
        %v1221 = vsel %vm1093, -1e+30, %v854
        %v1222 = vmax.f32 %v1190, %v1194
        %v1223 = vmax.f32 %v1191, %v1195
        %v1224 = vmax.f32 %v1192, %v1196
        %v1225 = vmax.f32 %v1193, %v1197
        %v1226 = vmax.f32 %v1222, %v1198
        %v1227 = vmax.f32 %v1223, %v1199
        %v1228 = vmax.f32 %v1224, %v1200
        %v1229 = vmax.f32 %v1225, %v1201
        %v1230 = vmax.f32 %v1226, %v1202
        %v1231 = vmax.f32 %v1227, %v1203
        %v1232 = vmax.f32 %v1228, %v1204
        %v1233 = vmax.f32 %v1229, %v1205
        %v1234 = vmax.f32 %v1230, %v1206
        %v1235 = vmax.f32 %v1231, %v1207
        %v1236 = vmax.f32 %v1232, %v1208
        %v1237 = vmax.f32 %v1233, %v1209
        %v1238 = vmax.f32 %v1234, %v1210
        %v1239 = vmax.f32 %v1235, %v1211
        %v1240 = vmax.f32 %v1236, %v1212
        %v1241 = vmax.f32 %v1237, %v1213
        %v1242 = vmax.f32 %v1238, %v1214
        %v1243 = vmax.f32 %v1239, %v1215
        %v1244 = vmax.f32 %v1240, %v1216
        %v1245 = vmax.f32 %v1241, %v1217
        %v1246 = vmax.f32 %v1242, %v1218
        %v1247 = vmax.f32 %v1243, %v1219
        %v1248 = vmax.f32 %v1244, %v1220
        %v1249 = vmax.f32 %v1245, %v1221
        %v1250 = vmax.f32 %v1246, %v1247
        %v1251 = vmax.f32 %v1248, %v1249
        %v1252 = vmax.f32 %v1250, %v1251
        %v1253 = vrot.slane %v1252, 4
        %v1254 = vmax.f32 %v1252, %v1253
        %v1255 = vrot.slane %v1254, 2
        %v1256 = vmax.f32 %v1254, %v1255
        %v1257 = vrot.slane %v1256, 1
        %v1258 = vmax.f32 %v1256, %v1257
        %vm1259 = vcmp.eq.f32.partialorder %v1190, %v1258
        %vm1260 = vcmp.eq.f32.partialorder %v1191, %v1258
        %vm1261 = vcmp.eq.f32.partialorder %v1192, %v1258
        %vm1262 = vcmp.eq.f32.partialorder %v1193, %v1258
        %vm1263 = vcmp.eq.f32.partialorder %v1194, %v1258
        %vm1264 = vcmp.eq.f32.partialorder %v1195, %v1258
        %vm1265 = vcmp.eq.f32.partialorder %v1196, %v1258
        %vm1266 = vcmp.eq.f32.partialorder %v1197, %v1258
        %vm1267 = vcmp.eq.f32.partialorder %v1198, %v1258
        %vm1268 = vcmp.eq.f32.partialorder %v1199, %v1258
        %vm1269 = vcmp.eq.f32.partialorder %v1200, %v1258
        %vm1270 = vcmp.eq.f32.partialorder %v1201, %v1258
        %vm1271 = vcmp.eq.f32.partialorder %v1202, %v1258
        %vm1272 = vcmp.eq.f32.partialorder %v1203, %v1258
        %vm1273 = vcmp.eq.f32.partialorder %v1204, %v1258
        %vm1274 = vcmp.eq.f32.partialorder %v1205, %v1258
        %vm1275 = vcmp.eq.f32.partialorder %v1206, %v1258
        %vm1276 = vcmp.eq.f32.partialorder %v1207, %v1258
        %vm1277 = vcmp.eq.f32.partialorder %v1208, %v1258
        %vm1278 = vcmp.eq.f32.partialorder %v1209, %v1258
        %vm1279 = vcmp.eq.f32.partialorder %v1210, %v1258
        %vm1280 = vcmp.eq.f32.partialorder %v1211, %v1258
        %vm1281 = vcmp.eq.f32.partialorder %v1212, %v1258
        %vm1282 = vcmp.eq.f32.partialorder %v1213, %v1258
        %vm1283 = vcmp.eq.f32.partialorder %v1214, %v1258
        %vm1284 = vcmp.eq.f32.partialorder %v1215, %v1258
        %vm1285 = vcmp.eq.f32.partialorder %v1216, %v1258
        %vm1286 = vcmp.eq.f32.partialorder %v1217, %v1258
        %vm1287 = vcmp.eq.f32.partialorder %v1218, %v1258
        %vm1288 = vcmp.eq.f32.partialorder %v1219, %v1258
        %vm1289 = vcmp.eq.f32.partialorder %v1220, %v1258
        %vm1290 = vcmp.eq.f32.partialorder %v1221, %v1258
        %v1291 = vsel %vm1259, %v858, 256
        %v1292 = vsel %vm1260, %v859, 256
        %v1293 = vsel %vm1261, %v860, 256
        %v1294 = vsel %vm1262, %v861, 256
        %v1295 = vsel %vm1263, %v862, 256
        %v1296 = vsel %vm1264, %v863, 256
        %v1297 = vsel %vm1265, %v864, 256
        %v1298 = vsel %vm1266, %v865, 256
        %v1299 = vsel %vm1267, %v866, 256
        %v1300 = vsel %vm1268, %v867, 256
        %v1301 = vsel %vm1269, %v868, 256
        %v1302 = vsel %vm1270, %v869, 256
        %v1303 = vsel %vm1271, %v870, 256
        %v1304 = vsel %vm1272, %v871, 256
        %v1305 = vsel %vm1273, %v872, 256
        %v1306 = vsel %vm1274, %v873, 256
        %v1307 = vsel %vm1275, %v874, 256
        %v1308 = vsel %vm1276, %v875, 256
        %v1309 = vsel %vm1277, %v876, 256
        %v1310 = vsel %vm1278, %v877, 256
        %v1311 = vsel %vm1279, %v878, 256
        %v1312 = vsel %vm1280, %v879, 256
        %v1313 = vsel %vm1281, %v880, 256
        %v1314 = vsel %vm1282, %v881, 256
        %v1315 = vsel %vm1283, %v882, 256
        %v1316 = vsel %vm1284, %v883, 256
        %v1317 = vsel %vm1285, %v884, 256
        %v1318 = vsel %vm1286, %v885, 256
        %v1319 = vsel %vm1287, %v886, 256
        %v1320 = vsel %vm1288, %v887, 256
        %v1321 = vsel %vm1289, %v888, 256
        %v1322 = vsel %vm1290, %v889, 256
        %vm1323 = vcmp.lt.s32.totalorder %v1291, %v1295
        %v1324 = vsel %vm1323, %v1291, %v1295
        %vm1325 = vcmp.lt.s32.totalorder %v1292, %v1296
        %v1326 = vsel %vm1325, %v1292, %v1296
        %vm1327 = vcmp.lt.s32.totalorder %v1293, %v1297
        %v1328 = vsel %vm1327, %v1293, %v1297
        %vm1329 = vcmp.lt.s32.totalorder %v1294, %v1298
        %v1330 = vsel %vm1329, %v1294, %v1298
        %vm1331 = vcmp.lt.s32.totalorder %v1324, %v1299
        %v1332 = vsel %vm1331, %v1324, %v1299
        %vm1333 = vcmp.lt.s32.totalorder %v1326, %v1300
        %v1334 = vsel %vm1333, %v1326, %v1300
        %vm1335 = vcmp.lt.s32.totalorder %v1328, %v1301
        %v1336 = vsel %vm1335, %v1328, %v1301
        %vm1337 = vcmp.lt.s32.totalorder %v1330, %v1302
        %v1338 = vsel %vm1337, %v1330, %v1302
        %vm1339 = vcmp.lt.s32.totalorder %v1332, %v1303
        %v1340 = vsel %vm1339, %v1332, %v1303
        %vm1341 = vcmp.lt.s32.totalorder %v1334, %v1304
        %v1342 = vsel %vm1341, %v1334, %v1304
        %vm1343 = vcmp.lt.s32.totalorder %v1336, %v1305
        %v1344 = vsel %vm1343, %v1336, %v1305
        %vm1345 = vcmp.lt.s32.totalorder %v1338, %v1306
        %v1346 = vsel %vm1345, %v1338, %v1306
        %vm1347 = vcmp.lt.s32.totalorder %v1340, %v1307
        %v1348 = vsel %vm1347, %v1340, %v1307
        %vm1349 = vcmp.lt.s32.totalorder %v1342, %v1308
        %v1350 = vsel %vm1349, %v1342, %v1308
        %vm1351 = vcmp.lt.s32.totalorder %v1344, %v1309
        %v1352 = vsel %vm1351, %v1344, %v1309
        %vm1353 = vcmp.lt.s32.totalorder %v1346, %v1310
        %v1354 = vsel %vm1353, %v1346, %v1310
        %vm1355 = vcmp.lt.s32.totalorder %v1348, %v1311
        %v1356 = vsel %vm1355, %v1348, %v1311
        %vm1357 = vcmp.lt.s32.totalorder %v1350, %v1312
        %v1358 = vsel %vm1357, %v1350, %v1312
        %vm1359 = vcmp.lt.s32.totalorder %v1352, %v1313
        %v1360 = vsel %vm1359, %v1352, %v1313
        %vm1361 = vcmp.lt.s32.totalorder %v1354, %v1314
        %v1362 = vsel %vm1361, %v1354, %v1314
        %vm1363 = vcmp.lt.s32.totalorder %v1356, %v1315
        %v1364 = vsel %vm1363, %v1356, %v1315
        %vm1365 = vcmp.lt.s32.totalorder %v1358, %v1316
        %v1366 = vsel %vm1365, %v1358, %v1316
        %vm1367 = vcmp.lt.s32.totalorder %v1360, %v1317
        %v1368 = vsel %vm1367, %v1360, %v1317
        %vm1369 = vcmp.lt.s32.totalorder %v1362, %v1318
        %v1370 = vsel %vm1369, %v1362, %v1318
        %vm1371 = vcmp.lt.s32.totalorder %v1364, %v1319
        %v1372 = vsel %vm1371, %v1364, %v1319
        %vm1373 = vcmp.lt.s32.totalorder %v1366, %v1320
        %v1374 = vsel %vm1373, %v1366, %v1320
        %vm1375 = vcmp.lt.s32.totalorder %v1368, %v1321
        %v1376 = vsel %vm1375, %v1368, %v1321
        %vm1377 = vcmp.lt.s32.totalorder %v1370, %v1322
        %v1378 = vsel %vm1377, %v1370, %v1322
        %vm1379 = vcmp.lt.s32.totalorder %v1372, %v1374
        %v1380 = vsel %vm1379, %v1372, %v1374
        %vm1381 = vcmp.lt.s32.totalorder %v1376, %v1378
        %v1382 = vsel %vm1381, %v1376, %v1378
        %vm1383 = vcmp.lt.s32.totalorder %v1380, %v1382
        %v1384 = vsel %vm1383, %v1380, %v1382
        %v1385 = vrot.slane %v1384, 4
        %vm1386 = vcmp.lt.s32.totalorder %v1384, %v1385
        %v1387 = vsel %vm1386, %v1384, %v1385
        %v1388 = vrot.slane %v1387, 2
        %vm1389 = vcmp.lt.s32.totalorder %v1387, %v1388
        %v1390 = vsel %vm1389, %v1387, %v1388
        %v1391 = vrot.slane %v1390, 1
        %vm1392 = vcmp.lt.s32.totalorder %v1390, %v1391
        %v1393 = vsel %vm1392, %v1390, %v1391
        %vm1394 = vcmp.eq.s32.totalorder %v858, %v1393
        %vm1395 = vcmp.eq.s32.totalorder %v859, %v1393
        %vm1396 = vcmp.eq.s32.totalorder %v860, %v1393
        %vm1397 = vcmp.eq.s32.totalorder %v861, %v1393
        %vm1398 = vcmp.eq.s32.totalorder %v862, %v1393
        %vm1399 = vcmp.eq.s32.totalorder %v863, %v1393
        %vm1400 = vcmp.eq.s32.totalorder %v864, %v1393
        %vm1401 = vcmp.eq.s32.totalorder %v865, %v1393
        %vm1402 = vcmp.eq.s32.totalorder %v866, %v1393
        %vm1403 = vcmp.eq.s32.totalorder %v867, %v1393
        %vm1404 = vcmp.eq.s32.totalorder %v868, %v1393
        %vm1405 = vcmp.eq.s32.totalorder %v869, %v1393
        %vm1406 = vcmp.eq.s32.totalorder %v870, %v1393
        %vm1407 = vcmp.eq.s32.totalorder %v871, %v1393
        %vm1408 = vcmp.eq.s32.totalorder %v872, %v1393
        %vm1409 = vcmp.eq.s32.totalorder %v873, %v1393
        %vm1410 = vcmp.eq.s32.totalorder %v874, %v1393
        %vm1411 = vcmp.eq.s32.totalorder %v875, %v1393
        %vm1412 = vcmp.eq.s32.totalorder %v876, %v1393
        %vm1413 = vcmp.eq.s32.totalorder %v877, %v1393
        %vm1414 = vcmp.eq.s32.totalorder %v878, %v1393
        %vm1415 = vcmp.eq.s32.totalorder %v879, %v1393
        %vm1416 = vcmp.eq.s32.totalorder %v880, %v1393
        %vm1417 = vcmp.eq.s32.totalorder %v881, %v1393
        %vm1418 = vcmp.eq.s32.totalorder %v882, %v1393
        %vm1419 = vcmp.eq.s32.totalorder %v883, %v1393
        %vm1420 = vcmp.eq.s32.totalorder %v884, %v1393
        %vm1421 = vcmp.eq.s32.totalorder %v885, %v1393
        %vm1422 = vcmp.eq.s32.totalorder %v886, %v1393
        %vm1423 = vcmp.eq.s32.totalorder %v887, %v1393
        %vm1424 = vcmp.eq.s32.totalorder %v888, %v1393
        %vm1425 = vcmp.eq.s32.totalorder %v889, %v1393
        %v1426 = vsel %vm1394, 1, 0
        %v1427 = vsel %vm1395, 1, 0
        %v1428 = vsel %vm1396, 1, 0
        %v1429 = vsel %vm1397, 1, 0
        %v1430 = vsel %vm1398, 1, 0
        %v1431 = vsel %vm1399, 1, 0
        %v1432 = vsel %vm1400, 1, 0
        %v1433 = vsel %vm1401, 1, 0
        %v1434 = vsel %vm1402, 1, 0
        %v1435 = vsel %vm1403, 1, 0
        %v1436 = vsel %vm1404, 1, 0
        %v1437 = vsel %vm1405, 1, 0
        %v1438 = vsel %vm1406, 1, 0
        %v1439 = vsel %vm1407, 1, 0
        %v1440 = vsel %vm1408, 1, 0
        %v1441 = vsel %vm1409, 1, 0
        %v1442 = vsel %vm1410, 1, 0
        %v1443 = vsel %vm1411, 1, 0
        %v1444 = vsel %vm1412, 1, 0
        %v1445 = vsel %vm1413, 1, 0
        %v1446 = vsel %vm1414, 1, 0
        %v1447 = vsel %vm1415, 1, 0
        %v1448 = vsel %vm1416, 1, 0
        %v1449 = vsel %vm1417, 1, 0
        %v1450 = vsel %vm1418, 1, 0
        %v1451 = vsel %vm1419, 1, 0
        %v1452 = vsel %vm1420, 1, 0
        %v1453 = vsel %vm1421, 1, 0
        %v1454 = vsel %vm1422, 1, 0
        %v1455 = vsel %vm1423, 1, 0
        %v1456 = vsel %vm1424, 1, 0
        %v1457 = vsel %vm1425, 1, 0
        %v1458 = vcvt.s32.f32 %v1426
        %v1459 = vcvt.s32.f32 %v1427
        %v1460 = vcvt.s32.f32 %v1428
        %v1461 = vcvt.s32.f32 %v1429
        %v1462 = vcvt.s32.f32 %v1430
        %v1463 = vcvt.s32.f32 %v1431
        %v1464 = vcvt.s32.f32 %v1432
        %v1465 = vcvt.s32.f32 %v1433
        %v1466 = vcvt.s32.f32 %v1434
        %v1467 = vcvt.s32.f32 %v1435
        %v1468 = vcvt.s32.f32 %v1436
        %v1469 = vcvt.s32.f32 %v1437
        %v1470 = vcvt.s32.f32 %v1438
        %v1471 = vcvt.s32.f32 %v1439
        %v1472 = vcvt.s32.f32 %v1440
        %v1473 = vcvt.s32.f32 %v1441
        %v1474 = vcvt.s32.f32 %v1442
        %v1475 = vcvt.s32.f32 %v1443
        %v1476 = vcvt.s32.f32 %v1444
        %v1477 = vcvt.s32.f32 %v1445
        %v1478 = vcvt.s32.f32 %v1446
        %v1479 = vcvt.s32.f32 %v1447
        %v1480 = vcvt.s32.f32 %v1448
        %v1481 = vcvt.s32.f32 %v1449
        %v1482 = vcvt.s32.f32 %v1450
        %v1483 = vcvt.s32.f32 %v1451
        %v1484 = vcvt.s32.f32 %v1452
        %v1485 = vcvt.s32.f32 %v1453
        %v1486 = vcvt.s32.f32 %v1454
        %v1487 = vcvt.s32.f32 %v1455
        %v1488 = vcvt.s32.f32 %v1456
        %v1489 = vcvt.s32.f32 %v1457
        %1490 = vst [vmem:[#allocation4 + $0x100] sm:$0xff] %v1458
        %1491 = vst [vmem:[#allocation4 + $0x108] sm:$0xff] %v1459
        %1492 = vst [vmem:[#allocation4 + $0x110] sm:$0xff] %v1460
        %1493 = vst [vmem:[#allocation4 + $0x118] sm:$0xff] %v1461
        %1494 = vst [vmem:[#allocation4 + $0x120] sm:$0xff] %v1462
        %1495 = vst [vmem:[#allocation4 + $0x128] sm:$0xff] %v1463
        %1496 = vst [vmem:[#allocation4 + $0x130] sm:$0xff] %v1464
        %1497 = vst [vmem:[#allocation4 + $0x138] sm:$0xff] %v1465
        %1498 = vst [vmem:[#allocation4 + $0x140] sm:$0xff] %v1466
        %1499 = vst [vmem:[#allocation4 + $0x148] sm:$0xff] %v1467
        %1500 = vst [vmem:[#allocation4 + $0x150] sm:$0xff] %v1468
        %1501 = vst [vmem:[#allocation4 + $0x158] sm:$0xff] %v1469
        %1502 = vst [vmem:[#allocation4 + $0x160] sm:$0xff] %v1470
        %1503 = vst [vmem:[#allocation4 + $0x168] sm:$0xff] %v1471
        %1504 = vst [vmem:[#allocation4 + $0x170] sm:$0xff] %v1472
        %1505 = vst [vmem:[#allocation4 + $0x178] sm:$0xff] %v1473
        %1506 = vst [vmem:[#allocation4 + $0x180] sm:$0xff] %v1474
        %1507 = vst [vmem:[#allocation4 + $0x188] sm:$0xff] %v1475
        %1508 = vst [vmem:[#allocation4 + $0x190] sm:$0xff] %v1476
        %1509 = vst [vmem:[#allocation4 + $0x198] sm:$0xff] %v1477
        %1510 = vst [vmem:[#allocation4 + $0x1a0] sm:$0xff] %v1478
        %1511 = vst [vmem:[#allocation4 + $0x1a8] sm:$0xff] %v1479
        %1512 = vst [vmem:[#allocation4 + $0x1b0] sm:$0xff] %v1480
        %1513 = vst [vmem:[#allocation4 + $0x1b8] sm:$0xff] %v1481
        %1514 = vst [vmem:[#allocation4 + $0x1c0] sm:$0xff] %v1482
        %1515 = vst [vmem:[#allocation4 + $0x1c8] sm:$0xff] %v1483
        %1516 = vst [vmem:[#allocation4 + $0x1d0] sm:$0xff] %v1484
        %1517 = vst [vmem:[#allocation4 + $0x1d8] sm:$0xff] %v1485
        %1518 = vst [vmem:[#allocation4 + $0x1e0] sm:$0xff] %v1486
        %1519 = vst [vmem:[#allocation4 + $0x1e8] sm:$0xff] %v1487
        %1520 = vst [vmem:[#allocation4 + $0x1f0] sm:$0xff] %v1488
        %1521 = vst [vmem:[#allocation4 + $0x1f8] sm:$0xff] %v1489
        %v1522 = vsel %vm1394, -1e+30, %v1190
        %v1523 = vsel %vm1395, -1e+30, %v1191
        %v1524 = vsel %vm1396, -1e+30, %v1192
        %v1525 = vsel %vm1397, -1e+30, %v1193
        %v1526 = vsel %vm1398, -1e+30, %v1194
        %v1527 = vsel %vm1399, -1e+30, %v1195
        %v1528 = vsel %vm1400, -1e+30, %v1196
        %v1529 = vsel %vm1401, -1e+30, %v1197
        %v1530 = vsel %vm1402, -1e+30, %v1198
        %v1531 = vsel %vm1403, -1e+30, %v1199
        %v1532 = vsel %vm1404, -1e+30, %v1200
        %v1533 = vsel %vm1405, -1e+30, %v1201
        %v1534 = vsel %vm1406, -1e+30, %v1202
        %v1535 = vsel %vm1407, -1e+30, %v1203
        %v1536 = vsel %vm1408, -1e+30, %v1204
        %v1537 = vsel %vm1409, -1e+30, %v1205
        %v1538 = vsel %vm1410, -1e+30, %v1206
        %v1539 = vsel %vm1411, -1e+30, %v1207
        %v1540 = vsel %vm1412, -1e+30, %v1208
        %v1541 = vsel %vm1413, -1e+30, %v1209
        %v1542 = vsel %vm1414, -1e+30, %v1210
        %v1543 = vsel %vm1415, -1e+30, %v1211
        %v1544 = vsel %vm1416, -1e+30, %v1212
        %v1545 = vsel %vm1417, -1e+30, %v1213
        %v1546 = vsel %vm1418, -1e+30, %v1214
        %v1547 = vsel %vm1419, -1e+30, %v1215
        %v1548 = vsel %vm1420, -1e+30, %v1216
        %v1549 = vsel %vm1421, -1e+30, %v1217
        %v1550 = vsel %vm1422, -1e+30, %v1218
        %v1551 = vsel %vm1423, -1e+30, %v1219
        %v1552 = vsel %vm1424, -1e+30, %v1220
        %v1553 = vsel %vm1425, -1e+30, %v1221
        %v1554 = vmax.f32 %v1522, %v1526
        %v1555 = vmax.f32 %v1523, %v1527
        %v1556 = vmax.f32 %v1524, %v1528
        %v1557 = vmax.f32 %v1525, %v1529
        %v1558 = vmax.f32 %v1554, %v1530
        %v1559 = vmax.f32 %v1555, %v1531
        %v1560 = vmax.f32 %v1556, %v1532
        %v1561 = vmax.f32 %v1557, %v1533
        %v1562 = vmax.f32 %v1558, %v1534
        %v1563 = vmax.f32 %v1559, %v1535
        %v1564 = vmax.f32 %v1560, %v1536
        %v1565 = vmax.f32 %v1561, %v1537
        %v1566 = vmax.f32 %v1562, %v1538
        %v1567 = vmax.f32 %v1563, %v1539
        %v1568 = vmax.f32 %v1564, %v1540
        %v1569 = vmax.f32 %v1565, %v1541
        %v1570 = vmax.f32 %v1566, %v1542
        %v1571 = vmax.f32 %v1567, %v1543
        %v1572 = vmax.f32 %v1568, %v1544
        %v1573 = vmax.f32 %v1569, %v1545
        %v1574 = vmax.f32 %v1570, %v1546
        %v1575 = vmax.f32 %v1571, %v1547
        %v1576 = vmax.f32 %v1572, %v1548
        %v1577 = vmax.f32 %v1573, %v1549
        %v1578 = vmax.f32 %v1574, %v1550
        %v1579 = vmax.f32 %v1575, %v1551
        %v1580 = vmax.f32 %v1576, %v1552
        %v1581 = vmax.f32 %v1577, %v1553
        %v1582 = vmax.f32 %v1578, %v1579
        %v1583 = vmax.f32 %v1580, %v1581
        %v1584 = vmax.f32 %v1582, %v1583
        %v1585 = vrot.slane %v1584, 4
        %v1586 = vmax.f32 %v1584, %v1585
        %v1587 = vrot.slane %v1586, 2
        %v1588 = vmax.f32 %v1586, %v1587
        %v1589 = vrot.slane %v1588, 1
        %v1590 = vmax.f32 %v1588, %v1589
        %vm1591 = vcmp.eq.f32.partialorder %v1522, %v1590
        %vm1592 = vcmp.eq.f32.partialorder %v1523, %v1590
        %vm1593 = vcmp.eq.f32.partialorder %v1524, %v1590
        %vm1594 = vcmp.eq.f32.partialorder %v1525, %v1590
        %vm1595 = vcmp.eq.f32.partialorder %v1526, %v1590
        %vm1596 = vcmp.eq.f32.partialorder %v1527, %v1590
        %vm1597 = vcmp.eq.f32.partialorder %v1528, %v1590
        %vm1598 = vcmp.eq.f32.partialorder %v1529, %v1590
        %vm1599 = vcmp.eq.f32.partialorder %v1530, %v1590
        %vm1600 = vcmp.eq.f32.partialorder %v1531, %v1590
        %vm1601 = vcmp.eq.f32.partialorder %v1532, %v1590
        %vm1602 = vcmp.eq.f32.partialorder %v1533, %v1590
        %vm1603 = vcmp.eq.f32.partialorder %v1534, %v1590
        %vm1604 = vcmp.eq.f32.partialorder %v1535, %v1590
        %vm1605 = vcmp.eq.f32.partialorder %v1536, %v1590
        %vm1606 = vcmp.eq.f32.partialorder %v1537, %v1590
        %vm1607 = vcmp.eq.f32.partialorder %v1538, %v1590
        %vm1608 = vcmp.eq.f32.partialorder %v1539, %v1590
        %vm1609 = vcmp.eq.f32.partialorder %v1540, %v1590
        %vm1610 = vcmp.eq.f32.partialorder %v1541, %v1590
        %vm1611 = vcmp.eq.f32.partialorder %v1542, %v1590
        %vm1612 = vcmp.eq.f32.partialorder %v1543, %v1590
        %vm1613 = vcmp.eq.f32.partialorder %v1544, %v1590
        %vm1614 = vcmp.eq.f32.partialorder %v1545, %v1590
        %vm1615 = vcmp.eq.f32.partialorder %v1546, %v1590
        %vm1616 = vcmp.eq.f32.partialorder %v1547, %v1590
        %vm1617 = vcmp.eq.f32.partialorder %v1548, %v1590
        %vm1618 = vcmp.eq.f32.partialorder %v1549, %v1590
        %vm1619 = vcmp.eq.f32.partialorder %v1550, %v1590
        %vm1620 = vcmp.eq.f32.partialorder %v1551, %v1590
        %vm1621 = vcmp.eq.f32.partialorder %v1552, %v1590
        %vm1622 = vcmp.eq.f32.partialorder %v1553, %v1590
        %v1623 = vsel %vm1591, %v858, 256
        %v1624 = vsel %vm1592, %v859, 256
        %v1625 = vsel %vm1593, %v860, 256
        %v1626 = vsel %vm1594, %v861, 256
        %v1627 = vsel %vm1595, %v862, 256
        %v1628 = vsel %vm1596, %v863, 256
        %v1629 = vsel %vm1597, %v864, 256
        %v1630 = vsel %vm1598, %v865, 256
        %v1631 = vsel %vm1599, %v866, 256
        %v1632 = vsel %vm1600, %v867, 256
        %v1633 = vsel %vm1601, %v868, 256
        %v1634 = vsel %vm1602, %v869, 256
        %v1635 = vsel %vm1603, %v870, 256
        %v1636 = vsel %vm1604, %v871, 256
        %v1637 = vsel %vm1605, %v872, 256
        %v1638 = vsel %vm1606, %v873, 256
        %v1639 = vsel %vm1607, %v874, 256
        %v1640 = vsel %vm1608, %v875, 256
        %v1641 = vsel %vm1609, %v876, 256
        %v1642 = vsel %vm1610, %v877, 256
        %v1643 = vsel %vm1611, %v878, 256
        %v1644 = vsel %vm1612, %v879, 256
        %v1645 = vsel %vm1613, %v880, 256
        %v1646 = vsel %vm1614, %v881, 256
        %v1647 = vsel %vm1615, %v882, 256
        %v1648 = vsel %vm1616, %v883, 256
        %v1649 = vsel %vm1617, %v884, 256
        %v1650 = vsel %vm1618, %v885, 256
        %v1651 = vsel %vm1619, %v886, 256
        %v1652 = vsel %vm1620, %v887, 256
        %v1653 = vsel %vm1621, %v888, 256
        %v1654 = vsel %vm1622, %v889, 256
        %vm1655 = vcmp.lt.s32.totalorder %v1623, %v1627
        %v1656 = vsel %vm1655, %v1623, %v1627
        %vm1657 = vcmp.lt.s32.totalorder %v1624, %v1628
        %v1658 = vsel %vm1657, %v1624, %v1628
        %vm1659 = vcmp.lt.s32.totalorder %v1625, %v1629
        %v1660 = vsel %vm1659, %v1625, %v1629
        %vm1661 = vcmp.lt.s32.totalorder %v1626, %v1630
        %v1662 = vsel %vm1661, %v1626, %v1630
        %vm1663 = vcmp.lt.s32.totalorder %v1656, %v1631
        %v1664 = vsel %vm1663, %v1656, %v1631
        %vm1665 = vcmp.lt.s32.totalorder %v1658, %v1632
        %v1666 = vsel %vm1665, %v1658, %v1632
        %vm1667 = vcmp.lt.s32.totalorder %v1660, %v1633
        %v1668 = vsel %vm1667, %v1660, %v1633
        %vm1669 = vcmp.lt.s32.totalorder %v1662, %v1634
        %v1670 = vsel %vm1669, %v1662, %v1634
        %vm1671 = vcmp.lt.s32.totalorder %v1664, %v1635
        %v1672 = vsel %vm1671, %v1664, %v1635
        %vm1673 = vcmp.lt.s32.totalorder %v1666, %v1636
        %v1674 = vsel %vm1673, %v1666, %v1636
        %vm1675 = vcmp.lt.s32.totalorder %v1668, %v1637
        %v1676 = vsel %vm1675, %v1668, %v1637
        %vm1677 = vcmp.lt.s32.totalorder %v1670, %v1638
        %v1678 = vsel %vm1677, %v1670, %v1638
        %vm1679 = vcmp.lt.s32.totalorder %v1672, %v1639
        %v1680 = vsel %vm1679, %v1672, %v1639
        %vm1681 = vcmp.lt.s32.totalorder %v1674, %v1640
        %v1682 = vsel %vm1681, %v1674, %v1640
        %vm1683 = vcmp.lt.s32.totalorder %v1676, %v1641
        %v1684 = vsel %vm1683, %v1676, %v1641
        %vm1685 = vcmp.lt.s32.totalorder %v1678, %v1642
        %v1686 = vsel %vm1685, %v1678, %v1642
        %vm1687 = vcmp.lt.s32.totalorder %v1680, %v1643
        %v1688 = vsel %vm1687, %v1680, %v1643
        %vm1689 = vcmp.lt.s32.totalorder %v1682, %v1644
        %v1690 = vsel %vm1689, %v1682, %v1644
        %vm1691 = vcmp.lt.s32.totalorder %v1684, %v1645
        %v1692 = vsel %vm1691, %v1684, %v1645
        %vm1693 = vcmp.lt.s32.totalorder %v1686, %v1646
        %v1694 = vsel %vm1693, %v1686, %v1646
        %vm1695 = vcmp.lt.s32.totalorder %v1688, %v1647
        %v1696 = vsel %vm1695, %v1688, %v1647
        %vm1697 = vcmp.lt.s32.totalorder %v1690, %v1648
        %v1698 = vsel %vm1697, %v1690, %v1648
        %vm1699 = vcmp.lt.s32.totalorder %v1692, %v1649
        %v1700 = vsel %vm1699, %v1692, %v1649
        %vm1701 = vcmp.lt.s32.totalorder %v1694, %v1650
        %v1702 = vsel %vm1701, %v1694, %v1650
        %vm1703 = vcmp.lt.s32.totalorder %v1696, %v1651
        %v1704 = vsel %vm1703, %v1696, %v1651
        %vm1705 = vcmp.lt.s32.totalorder %v1698, %v1652
        %v1706 = vsel %vm1705, %v1698, %v1652
        %vm1707 = vcmp.lt.s32.totalorder %v1700, %v1653
        %v1708 = vsel %vm1707, %v1700, %v1653
        %vm1709 = vcmp.lt.s32.totalorder %v1702, %v1654
        %v1710 = vsel %vm1709, %v1702, %v1654
        %vm1711 = vcmp.lt.s32.totalorder %v1704, %v1706
        %v1712 = vsel %vm1711, %v1704, %v1706
        %vm1713 = vcmp.lt.s32.totalorder %v1708, %v1710
        %v1714 = vsel %vm1713, %v1708, %v1710
        %vm1715 = vcmp.lt.s32.totalorder %v1712, %v1714
        %v1716 = vsel %vm1715, %v1712, %v1714
        %v1717 = vrot.slane %v1716, 4
        %vm1718 = vcmp.lt.s32.totalorder %v1716, %v1717
        %v1719 = vsel %vm1718, %v1716, %v1717
        %v1720 = vrot.slane %v1719, 2
        %vm1721 = vcmp.lt.s32.totalorder %v1719, %v1720
        %v1722 = vsel %vm1721, %v1719, %v1720
        %v1723 = vrot.slane %v1722, 1
        %vm1724 = vcmp.lt.s32.totalorder %v1722, %v1723
        %v1725 = vsel %vm1724, %v1722, %v1723
        %vm1726 = vcmp.eq.s32.totalorder %v858, %v1725
        %vm1727 = vcmp.eq.s32.totalorder %v859, %v1725
        %vm1728 = vcmp.eq.s32.totalorder %v860, %v1725
        %vm1729 = vcmp.eq.s32.totalorder %v861, %v1725
        %vm1730 = vcmp.eq.s32.totalorder %v862, %v1725
        %vm1731 = vcmp.eq.s32.totalorder %v863, %v1725
        %vm1732 = vcmp.eq.s32.totalorder %v864, %v1725
        %vm1733 = vcmp.eq.s32.totalorder %v865, %v1725
        %vm1734 = vcmp.eq.s32.totalorder %v866, %v1725
        %vm1735 = vcmp.eq.s32.totalorder %v867, %v1725
        %vm1736 = vcmp.eq.s32.totalorder %v868, %v1725
        %vm1737 = vcmp.eq.s32.totalorder %v869, %v1725
        %vm1738 = vcmp.eq.s32.totalorder %v870, %v1725
        %vm1739 = vcmp.eq.s32.totalorder %v871, %v1725
        %vm1740 = vcmp.eq.s32.totalorder %v872, %v1725
        %vm1741 = vcmp.eq.s32.totalorder %v873, %v1725
        %vm1742 = vcmp.eq.s32.totalorder %v874, %v1725
        %vm1743 = vcmp.eq.s32.totalorder %v875, %v1725
        %vm1744 = vcmp.eq.s32.totalorder %v876, %v1725
        %vm1745 = vcmp.eq.s32.totalorder %v877, %v1725
        %vm1746 = vcmp.eq.s32.totalorder %v878, %v1725
        %vm1747 = vcmp.eq.s32.totalorder %v879, %v1725
        %vm1748 = vcmp.eq.s32.totalorder %v880, %v1725
        %vm1749 = vcmp.eq.s32.totalorder %v881, %v1725
        %vm1750 = vcmp.eq.s32.totalorder %v882, %v1725
        %vm1751 = vcmp.eq.s32.totalorder %v883, %v1725
        %vm1752 = vcmp.eq.s32.totalorder %v884, %v1725
        %vm1753 = vcmp.eq.s32.totalorder %v885, %v1725
        %vm1754 = vcmp.eq.s32.totalorder %v886, %v1725
        %vm1755 = vcmp.eq.s32.totalorder %v887, %v1725
        %vm1756 = vcmp.eq.s32.totalorder %v888, %v1725
        %vm1757 = vcmp.eq.s32.totalorder %v889, %v1725
        %v1758 = vsel %vm1726, 1, 0
        %v1759 = vsel %vm1727, 1, 0
        %v1760 = vsel %vm1728, 1, 0
        %v1761 = vsel %vm1729, 1, 0
        %v1762 = vsel %vm1730, 1, 0
        %v1763 = vsel %vm1731, 1, 0
        %v1764 = vsel %vm1732, 1, 0
        %v1765 = vsel %vm1733, 1, 0
        %v1766 = vsel %vm1734, 1, 0
        %v1767 = vsel %vm1735, 1, 0
        %v1768 = vsel %vm1736, 1, 0
        %v1769 = vsel %vm1737, 1, 0
        %v1770 = vsel %vm1738, 1, 0
        %v1771 = vsel %vm1739, 1, 0
        %v1772 = vsel %vm1740, 1, 0
        %v1773 = vsel %vm1741, 1, 0
        %v1774 = vsel %vm1742, 1, 0
        %v1775 = vsel %vm1743, 1, 0
        %v1776 = vsel %vm1744, 1, 0
        %v1777 = vsel %vm1745, 1, 0
        %v1778 = vsel %vm1746, 1, 0
        %v1779 = vsel %vm1747, 1, 0
        %v1780 = vsel %vm1748, 1, 0
        %v1781 = vsel %vm1749, 1, 0
        %v1782 = vsel %vm1750, 1, 0
        %v1783 = vsel %vm1751, 1, 0
        %v1784 = vsel %vm1752, 1, 0
        %v1785 = vsel %vm1753, 1, 0
        %v1786 = vsel %vm1754, 1, 0
        %v1787 = vsel %vm1755, 1, 0
        %v1788 = vsel %vm1756, 1, 0
        %v1789 = vsel %vm1757, 1, 0
        %v1790 = vcvt.s32.f32 %v1758
        %v1791 = vcvt.s32.f32 %v1759
        %v1792 = vcvt.s32.f32 %v1760
        %v1793 = vcvt.s32.f32 %v1761
        %v1794 = vcvt.s32.f32 %v1762
        %v1795 = vcvt.s32.f32 %v1763
        %v1796 = vcvt.s32.f32 %v1764
        %v1797 = vcvt.s32.f32 %v1765
        %v1798 = vcvt.s32.f32 %v1766
        %v1799 = vcvt.s32.f32 %v1767
        %v1800 = vcvt.s32.f32 %v1768
        %v1801 = vcvt.s32.f32 %v1769
        %v1802 = vcvt.s32.f32 %v1770
        %v1803 = vcvt.s32.f32 %v1771
        %v1804 = vcvt.s32.f32 %v1772
        %v1805 = vcvt.s32.f32 %v1773
        %v1806 = vcvt.s32.f32 %v1774
        %v1807 = vcvt.s32.f32 %v1775
        %v1808 = vcvt.s32.f32 %v1776
        %v1809 = vcvt.s32.f32 %v1777
        %v1810 = vcvt.s32.f32 %v1778
        %v1811 = vcvt.s32.f32 %v1779
        %v1812 = vcvt.s32.f32 %v1780
        %v1813 = vcvt.s32.f32 %v1781
        %v1814 = vcvt.s32.f32 %v1782
        %v1815 = vcvt.s32.f32 %v1783
        %v1816 = vcvt.s32.f32 %v1784
        %v1817 = vcvt.s32.f32 %v1785
        %v1818 = vcvt.s32.f32 %v1786
        %v1819 = vcvt.s32.f32 %v1787
        %v1820 = vcvt.s32.f32 %v1788
        %v1821 = vcvt.s32.f32 %v1789
        %1822 = vst [vmem:[#allocation4 + $0x200] sm:$0xff] %v1790
        %1823 = vst [vmem:[#allocation4 + $0x208] sm:$0xff] %v1791
        %1824 = vst [vmem:[#allocation4 + $0x210] sm:$0xff] %v1792
        %1825 = vst [vmem:[#allocation4 + $0x218] sm:$0xff] %v1793
        %1826 = vst [vmem:[#allocation4 + $0x220] sm:$0xff] %v1794
        %1827 = vst [vmem:[#allocation4 + $0x228] sm:$0xff] %v1795
        %1828 = vst [vmem:[#allocation4 + $0x230] sm:$0xff] %v1796
        %1829 = vst [vmem:[#allocation4 + $0x238] sm:$0xff] %v1797
        %1830 = vst [vmem:[#allocation4 + $0x240] sm:$0xff] %v1798
        %1831 = vst [vmem:[#allocation4 + $0x248] sm:$0xff] %v1799
        %1832 = vst [vmem:[#allocation4 + $0x250] sm:$0xff] %v1800
        %1833 = vst [vmem:[#allocation4 + $0x258] sm:$0xff] %v1801
        %1834 = vst [vmem:[#allocation4 + $0x260] sm:$0xff] %v1802
        %1835 = vst [vmem:[#allocation4 + $0x268] sm:$0xff] %v1803
        %1836 = vst [vmem:[#allocation4 + $0x270] sm:$0xff] %v1804
        %1837 = vst [vmem:[#allocation4 + $0x278] sm:$0xff] %v1805
        %1838 = vst [vmem:[#allocation4 + $0x280] sm:$0xff] %v1806
        %1839 = vst [vmem:[#allocation4 + $0x288] sm:$0xff] %v1807
        %1840 = vst [vmem:[#allocation4 + $0x290] sm:$0xff] %v1808
        %1841 = vst [vmem:[#allocation4 + $0x298] sm:$0xff] %v1809
        %1842 = vst [vmem:[#allocation4 + $0x2a0] sm:$0xff] %v1810
        %1843 = vst [vmem:[#allocation4 + $0x2a8] sm:$0xff] %v1811
        %1844 = vst [vmem:[#allocation4 + $0x2b0] sm:$0xff] %v1812
        %1845 = vst [vmem:[#allocation4 + $0x2b8] sm:$0xff] %v1813
        %1846 = vst [vmem:[#allocation4 + $0x2c0] sm:$0xff] %v1814
        %1847 = vst [vmem:[#allocation4 + $0x2c8] sm:$0xff] %v1815
        %1848 = vst [vmem:[#allocation4 + $0x2d0] sm:$0xff] %v1816
        %1849 = vst [vmem:[#allocation4 + $0x2d8] sm:$0xff] %v1817
        %1850 = vst [vmem:[#allocation4 + $0x2e0] sm:$0xff] %v1818
        %1851 = vst [vmem:[#allocation4 + $0x2e8] sm:$0xff] %v1819
        %1852 = vst [vmem:[#allocation4 + $0x2f0] sm:$0xff] %v1820
        %1853 = vst [vmem:[#allocation4 + $0x2f8] sm:$0xff] %v1821
        %v1854 = vld [vmem:[#allocation3] sm:$0xff]
        %v1855 = vld [vmem:[#allocation3 + $0x8] sm:$0xff]
        %v1856 = vld [vmem:[#allocation3 + $0x10] sm:$0xff]
        %v1857 = vld [vmem:[#allocation3 + $0x18] sm:$0xff]
        %v1858 = vld [vmem:[#allocation3 + $0x20] sm:$0xff]
        %v1859 = vld [vmem:[#allocation3 + $0x28] sm:$0xff]
        %v1860 = vld [vmem:[#allocation4] sm:$0xff]
        %v1861 = vld [vmem:[#allocation4 + $0x8] sm:$0xff]
        %v1862 = vld [vmem:[#allocation4 + $0x10] sm:$0xff]
        %v1863 = vld [vmem:[#allocation4 + $0x18] sm:$0xff]
        %v1864 = vld [vmem:[#allocation4 + $0x20] sm:$0xff]
        %v1865 = vld [vmem:[#allocation4 + $0x28] sm:$0xff]
        %v1866 = vld [vmem:[#allocation4 + $0x30] sm:$0xff]
        %v1867 = vld [vmem:[#allocation4 + $0x38] sm:$0xff]
        %v1868 = vld [vmem:[#allocation4 + $0x40] sm:$0xff]
        %v1869 = vld [vmem:[#allocation4 + $0x48] sm:$0xff]
        %v1870 = vld [vmem:[#allocation4 + $0x50] sm:$0xff]
        %v1871 = vld [vmem:[#allocation4 + $0x58] sm:$0xff]
        %v1872 = vld [vmem:[#allocation4 + $0x60] sm:$0xff]
        %v1873 = vld [vmem:[#allocation4 + $0x68] sm:$0xff]
        %v1874 = vld [vmem:[#allocation4 + $0x70] sm:$0xff]
        %v1875 = vld [vmem:[#allocation4 + $0x78] sm:$0xff]
        %v1876 = vld [vmem:[#allocation4 + $0x80] sm:$0xff]
        %v1877 = vld [vmem:[#allocation4 + $0x88] sm:$0xff]
        %v1878 = vld [vmem:[#allocation4 + $0x90] sm:$0xff]
        %v1879 = vld [vmem:[#allocation4 + $0x98] sm:$0xff]
        %v1880 = vld [vmem:[#allocation4 + $0xa0] sm:$0xff]
        %v1881 = vld [vmem:[#allocation4 + $0xa8] sm:$0xff]
        %v1882 = vld [vmem:[#allocation4 + $0xb0] sm:$0xff]
        %v1883 = vld [vmem:[#allocation4 + $0xb8] sm:$0xff]
        %v1884 = vld [vmem:[#allocation4 + $0xc0] sm:$0xff]
        %v1885 = vld [vmem:[#allocation4 + $0xc8] sm:$0xff]
        %v1886 = vld [vmem:[#allocation4 + $0xd0] sm:$0xff]
        %v1887 = vld [vmem:[#allocation4 + $0xd8] sm:$0xff]
        %v1888 = vld [vmem:[#allocation4 + $0xe0] sm:$0xff]
        %v1889 = vld [vmem:[#allocation4 + $0xe8] sm:$0xff]
        %v1890 = vld [vmem:[#allocation4 + $0xf0] sm:$0xff]
        %v1891 = vld [vmem:[#allocation4 + $0xf8] sm:$0xff]
        %v1892 = vld [vmem:[#allocation4 + $0x100] sm:$0xff]
        %v1893 = vld [vmem:[#allocation4 + $0x108] sm:$0xff]
        %v1894 = vld [vmem:[#allocation4 + $0x110] sm:$0xff]
        %v1895 = vld [vmem:[#allocation4 + $0x118] sm:$0xff]
        %v1896 = vld [vmem:[#allocation4 + $0x120] sm:$0xff]
        %v1897 = vld [vmem:[#allocation4 + $0x128] sm:$0xff]
        %v1898 = vld [vmem:[#allocation4 + $0x130] sm:$0xff]
        %v1899 = vld [vmem:[#allocation4 + $0x138] sm:$0xff]
        %v1900 = vld [vmem:[#allocation4 + $0x140] sm:$0xff]
        %v1901 = vld [vmem:[#allocation4 + $0x148] sm:$0xff]
        %v1902 = vld [vmem:[#allocation4 + $0x150] sm:$0xff]
        %v1903 = vld [vmem:[#allocation4 + $0x158] sm:$0xff]
        %v1904 = vld [vmem:[#allocation4 + $0x160] sm:$0xff]
        %v1905 = vld [vmem:[#allocation4 + $0x168] sm:$0xff]
        %v1906 = vld [vmem:[#allocation4 + $0x170] sm:$0xff]
        %v1907 = vld [vmem:[#allocation4 + $0x178] sm:$0xff]
        %v1908 = vld [vmem:[#allocation4 + $0x180] sm:$0xff]
        %v1909 = vld [vmem:[#allocation4 + $0x188] sm:$0xff]
        %v1910 = vld [vmem:[#allocation4 + $0x190] sm:$0xff]
        %v1911 = vld [vmem:[#allocation4 + $0x198] sm:$0xff]
        %v1912 = vld [vmem:[#allocation4 + $0x1a0] sm:$0xff]
        %v1913 = vld [vmem:[#allocation4 + $0x1a8] sm:$0xff]
        %v1914 = vld [vmem:[#allocation4 + $0x1b0] sm:$0xff]
        %v1915 = vld [vmem:[#allocation4 + $0x1b8] sm:$0xff]
        %v1916 = vld [vmem:[#allocation4 + $0x1c0] sm:$0xff]
        %v1917 = vld [vmem:[#allocation4 + $0x1c8] sm:$0xff]
        %v1918 = vld [vmem:[#allocation4 + $0x1d0] sm:$0xff]
        %v1919 = vld [vmem:[#allocation4 + $0x1d8] sm:$0xff]
        %v1920 = vld [vmem:[#allocation4 + $0x1e0] sm:$0xff]
        %v1921 = vld [vmem:[#allocation4 + $0x1e8] sm:$0xff]
        %v1922 = vld [vmem:[#allocation4 + $0x1f0] sm:$0xff]
        %v1923 = vld [vmem:[#allocation4 + $0x1f8] sm:$0xff]
        %v1924 = vld [vmem:[#allocation4 + $0x200] sm:$0xff]
        %v1925 = vld [vmem:[#allocation4 + $0x208] sm:$0xff]
        %v1926 = vld [vmem:[#allocation4 + $0x210] sm:$0xff]
        %v1927 = vld [vmem:[#allocation4 + $0x218] sm:$0xff]
        %v1928 = vld [vmem:[#allocation4 + $0x220] sm:$0xff]
        %v1929 = vld [vmem:[#allocation4 + $0x228] sm:$0xff]
        %v1930 = vld [vmem:[#allocation4 + $0x230] sm:$0xff]
        %v1931 = vld [vmem:[#allocation4 + $0x238] sm:$0xff]
        %v1932 = vld [vmem:[#allocation4 + $0x240] sm:$0xff]
        %v1933 = vld [vmem:[#allocation4 + $0x248] sm:$0xff]
        %v1934 = vld [vmem:[#allocation4 + $0x250] sm:$0xff]
        %v1935 = vld [vmem:[#allocation4 + $0x258] sm:$0xff]
        %v1936 = vld [vmem:[#allocation4 + $0x260] sm:$0xff]
        %v1937 = vld [vmem:[#allocation4 + $0x268] sm:$0xff]
        %v1938 = vld [vmem:[#allocation4 + $0x270] sm:$0xff]
        %v1939 = vld [vmem:[#allocation4 + $0x278] sm:$0xff]
        %v1940 = vld [vmem:[#allocation4 + $0x280] sm:$0xff]
        %v1941 = vld [vmem:[#allocation4 + $0x288] sm:$0xff]
        %v1942 = vld [vmem:[#allocation4 + $0x290] sm:$0xff]
        %v1943 = vld [vmem:[#allocation4 + $0x298] sm:$0xff]
        %v1944 = vld [vmem:[#allocation4 + $0x2a0] sm:$0xff]
        %v1945 = vld [vmem:[#allocation4 + $0x2a8] sm:$0xff]
        %v1946 = vld [vmem:[#allocation4 + $0x2b0] sm:$0xff]
        %v1947 = vld [vmem:[#allocation4 + $0x2b8] sm:$0xff]
        %v1948 = vld [vmem:[#allocation4 + $0x2c0] sm:$0xff]
        %v1949 = vld [vmem:[#allocation4 + $0x2c8] sm:$0xff]
        %v1950 = vld [vmem:[#allocation4 + $0x2d0] sm:$0xff]
        %v1951 = vld [vmem:[#allocation4 + $0x2d8] sm:$0xff]
        %v1952 = vld [vmem:[#allocation4 + $0x2e0] sm:$0xff]
        %v1953 = vld [vmem:[#allocation4 + $0x2e8] sm:$0xff]
        %v1954 = vld [vmem:[#allocation4 + $0x2f0] sm:$0xff]
        %v1955 = vld [vmem:[#allocation4 + $0x2f8] sm:$0xff]
        %v1956 = vld [vmem:[%s2] sm:$0xff]
        %1958 = vset.pattern.permute.xlu0 0
        %1959 = vperm.xlu0 %1958, %v1956
        %v1960 = vpop.permute.xlu0 %1959
        %1962 = vmatprep.subr.mxu0 0.0
        %1963 = vmatpush1.msra.mxu0 %v1860
        %1964 = vmatprep.subr.mxu0 0.0
        %1965 = vmatpush1.msra.mxu0 %v1861
        %1966 = vmatprep.subr.mxu0 0.0
        %1967 = vmatpush1.msra.mxu0 %v1862
        %1968 = vmatprep.subr.mxu0 0.0
        %1969 = vmatpush1.msra.mxu0 %v1863
        %1970 = vmatprep.subr.mxu0 0.0
        %1971 = vmatpush1.msra.mxu0 %v1864
        %1972 = vmatprep.subr.mxu0 0.0
        %1973 = vmatpush1.msra.mxu0 %v1865
        %1974 = vmatprep.subr.mxu0 0.0
        %1975 = vmatpush1.msra.mxu0 %v1866
        %1976 = vmatprep.subr.mxu0 0.0
        %1977 = vmatpush1.msra.mxu0 %v1867
        %1978 = vmatprep.subr.mxu0 0.0
        %1979 = vmatpush1.msra.mxu0 %v1868
        %1980 = vmatprep.subr.mxu0 0.0
        %1981 = vmatpush1.msra.mxu0 %v1869
        %1982 = vmatprep.subr.mxu0 0.0
        %1983 = vmatpush1.msra.mxu0 %v1870
        %1984 = vmatprep.subr.mxu0 0.0
        %1985 = vmatpush1.msra.mxu0 %v1871
        %1986 = vmatprep.subr.mxu0 0.0
        %1987 = vmatpush1.msra.mxu0 %v1872
        %1988 = vmatprep.subr.mxu0 0.0
        %1989 = vmatpush1.msra.mxu0 %v1873
        %1990 = vmatprep.subr.mxu0 0.0
        %1991 = vmatpush1.msra.mxu0 %v1874
        %1992 = vmatprep.subr.mxu0 0.0
        %1993 = vmatpush1.msra.mxu0 %v1875
        %1994 = vmatprep.subr.mxu0 0.0
        %1995 = vmatpush1.msra.mxu0 %v1876
        %1996 = vmatprep.subr.mxu0 0.0
        %1997 = vmatpush1.msra.mxu0 %v1877
        %1998 = vmatprep.subr.mxu0 0.0
        %1999 = vmatpush1.msra.mxu0 %v1878
        %2000 = vmatprep.subr.mxu0 0.0
        %2001 = vmatpush1.msra.mxu0 %v1879
        %2002 = vmatprep.subr.mxu0 0.0
        %2003 = vmatpush1.msra.mxu0 %v1880
        %2004 = vmatprep.subr.mxu0 0.0
        %2005 = vmatpush1.msra.mxu0 %v1881
        %2006 = vmatprep.subr.mxu0 0.0
        %2007 = vmatpush1.msra.mxu0 %v1882
        %2008 = vmatprep.subr.mxu0 0.0
        %2009 = vmatpush1.msra.mxu0 %v1883
        %2010 = vmatprep.subr.mxu0 0.0
        %2011 = vmatpush1.msra.mxu0 %v1884
        %2012 = vmatprep.subr.mxu0 0.0
        %2013 = vmatpush1.msra.mxu0 %v1885
        %2014 = vmatprep.subr.mxu0 0.0
        %2015 = vmatpush1.msra.mxu0 %v1886
        %2016 = vmatprep.subr.mxu0 0.0
        %2017 = vmatpush1.msra.mxu0 %v1887
        %2018 = vmatprep.subr.mxu0 0.0
        %2019 = vmatpush1.msra.mxu0 %v1888
        %2020 = vmatprep.subr.mxu0 0.0
        %2021 = vmatpush1.msra.mxu0 %v1889
        %2022 = vmatprep.subr.mxu0 0.0
        %2023 = vmatpush1.msra.mxu0 %v1890
        %2024 = vmatprep.subr.mxu0 0.0
        %2025 = vmatpush1.msra.mxu0 %v1891
        %2026 = vmatprep.mubr.f32.mxu0 %v1855
        %2027 = vmatmul.mubr.f32.gmra.mrb[0].mxu0 %v1854
        %v2028 = vpop.f32.mrb[0].mxu0
        %v2029 = vadd.f32 %v1960, %v2028
        %v2030 = vpop.f32.mrb[0].mxu0
        %2031 = vdwg.mxu0
        %2032 = vmatprep.subr.mxu0 0.0
        %2033 = vmatpush1.msra.mxu0 %v1892
        %2034 = vmatprep.subr.mxu0 0.0
        %2035 = vmatpush1.msra.mxu0 %v1893
        %2036 = vmatprep.subr.mxu0 0.0
        %2037 = vmatpush1.msra.mxu0 %v1894
        %2038 = vmatprep.subr.mxu0 0.0
        %2039 = vmatpush1.msra.mxu0 %v1895
        %2040 = vmatprep.subr.mxu0 0.0
        %2041 = vmatpush1.msra.mxu0 %v1896
        %2042 = vmatprep.subr.mxu0 0.0
        %2043 = vmatpush1.msra.mxu0 %v1897
        %2044 = vmatprep.subr.mxu0 0.0
        %2045 = vmatpush1.msra.mxu0 %v1898
        %2046 = vmatprep.subr.mxu0 0.0
        %2047 = vmatpush1.msra.mxu0 %v1899
        %2048 = vmatprep.subr.mxu0 0.0
        %2049 = vmatpush1.msra.mxu0 %v1900
        %2050 = vmatprep.subr.mxu0 0.0
        %2051 = vmatpush1.msra.mxu0 %v1901
        %2052 = vmatprep.subr.mxu0 0.0
        %2053 = vmatpush1.msra.mxu0 %v1902
        %2054 = vmatprep.subr.mxu0 0.0
        %2055 = vmatpush1.msra.mxu0 %v1903
        %2056 = vmatprep.subr.mxu0 0.0
        %2057 = vmatpush1.msra.mxu0 %v1904
        %2058 = vmatprep.subr.mxu0 0.0
        %2059 = vmatpush1.msra.mxu0 %v1905
        %2060 = vmatprep.subr.mxu0 0.0
        %2061 = vmatpush1.msra.mxu0 %v1906
        %2062 = vmatprep.subr.mxu0 0.0
        %2063 = vmatpush1.msra.mxu0 %v1907
        %2064 = vmatprep.subr.mxu0 0.0
        %2065 = vmatpush1.msra.mxu0 %v1908
        %2066 = vmatprep.subr.mxu0 0.0
        %2067 = vmatpush1.msra.mxu0 %v1909
        %2068 = vmatprep.subr.mxu0 0.0
        %2069 = vmatpush1.msra.mxu0 %v1910
        %2070 = vmatprep.subr.mxu0 0.0
        %2071 = vmatpush1.msra.mxu0 %v1911
        %2072 = vmatprep.subr.mxu0 0.0
        %2073 = vmatpush1.msra.mxu0 %v1912
        %2074 = vmatprep.subr.mxu0 0.0
        %2075 = vmatpush1.msra.mxu0 %v1913
        %2076 = vmatprep.subr.mxu0 0.0
        %2077 = vmatpush1.msra.mxu0 %v1914
        %2078 = vmatprep.subr.mxu0 0.0
        %2079 = vmatpush1.msra.mxu0 %v1915
        %2080 = vmatprep.subr.mxu0 0.0
        %2081 = vmatpush1.msra.mxu0 %v1916
        %2082 = vmatprep.subr.mxu0 0.0
        %2083 = vmatpush1.msra.mxu0 %v1917
        %2084 = vmatprep.subr.mxu0 0.0
        %2085 = vmatpush1.msra.mxu0 %v1918
        %2086 = vmatprep.subr.mxu0 0.0
        %2087 = vmatpush1.msra.mxu0 %v1919
        %2088 = vmatprep.subr.mxu0 0.0
        %2089 = vmatpush1.msra.mxu0 %v1920
        %2090 = vmatprep.subr.mxu0 0.0
        %2091 = vmatpush1.msra.mxu0 %v1921
        %2092 = vmatprep.subr.mxu0 0.0
        %2093 = vmatpush1.msra.mxu0 %v1922
        %2094 = vmatprep.subr.mxu0 0.0
        %2095 = vmatpush1.msra.mxu0 %v1923
        %2096 = vmatprep.mubr.f32.mxu0 %v1857
        %2097 = vmatmul.mubr.f32.gmra.mrb[0].mxu0 %v1856
        %v2098 = vpop.f32.mrb[0].mxu0
        %v2099 = vadd.f32 %v2029, %v2098
        %v2100 = vpop.f32.mrb[0].mxu0
        %2101 = vdwg.mxu0
        %2102 = vmatprep.subr.mxu0 0.0
        %2103 = vmatpush1.msra.mxu0 %v1924
        %2104 = vmatprep.subr.mxu0 0.0
        %2105 = vmatpush1.msra.mxu0 %v1925
        %2106 = vmatprep.subr.mxu0 0.0
        %2107 = vmatpush1.msra.mxu0 %v1926
        %2108 = vmatprep.subr.mxu0 0.0
        %2109 = vmatpush1.msra.mxu0 %v1927
        %2110 = vmatprep.subr.mxu0 0.0
        %2111 = vmatpush1.msra.mxu0 %v1928
        %2112 = vmatprep.subr.mxu0 0.0
        %2113 = vmatpush1.msra.mxu0 %v1929
        %2114 = vmatprep.subr.mxu0 0.0
        %2115 = vmatpush1.msra.mxu0 %v1930
        %2116 = vmatprep.subr.mxu0 0.0
        %2117 = vmatpush1.msra.mxu0 %v1931
        %2118 = vmatprep.subr.mxu0 0.0
        %2119 = vmatpush1.msra.mxu0 %v1932
        %2120 = vmatprep.subr.mxu0 0.0
        %2121 = vmatpush1.msra.mxu0 %v1933
        %2122 = vmatprep.subr.mxu0 0.0
        %2123 = vmatpush1.msra.mxu0 %v1934
        %2124 = vmatprep.subr.mxu0 0.0
        %2125 = vmatpush1.msra.mxu0 %v1935
        %2126 = vmatprep.subr.mxu0 0.0
        %2127 = vmatpush1.msra.mxu0 %v1936
        %2128 = vmatprep.subr.mxu0 0.0
        %2129 = vmatpush1.msra.mxu0 %v1937
        %2130 = vmatprep.subr.mxu0 0.0
        %2131 = vmatpush1.msra.mxu0 %v1938
        %2132 = vmatprep.subr.mxu0 0.0
        %2133 = vmatpush1.msra.mxu0 %v1939
        %2134 = vmatprep.subr.mxu0 0.0
        %2135 = vmatpush1.msra.mxu0 %v1940
        %2136 = vmatprep.subr.mxu0 0.0
        %2137 = vmatpush1.msra.mxu0 %v1941
        %2138 = vmatprep.subr.mxu0 0.0
        %2139 = vmatpush1.msra.mxu0 %v1942
        %2140 = vmatprep.subr.mxu0 0.0
        %2141 = vmatpush1.msra.mxu0 %v1943
        %2142 = vmatprep.subr.mxu0 0.0
        %2143 = vmatpush1.msra.mxu0 %v1944
        %2144 = vmatprep.subr.mxu0 0.0
        %2145 = vmatpush1.msra.mxu0 %v1945
        %2146 = vmatprep.subr.mxu0 0.0
        %2147 = vmatpush1.msra.mxu0 %v1946
        %2148 = vmatprep.subr.mxu0 0.0
        %2149 = vmatpush1.msra.mxu0 %v1947
        %2150 = vmatprep.subr.mxu0 0.0
        %2151 = vmatpush1.msra.mxu0 %v1948
        %2152 = vmatprep.subr.mxu0 0.0
        %2153 = vmatpush1.msra.mxu0 %v1949
        %2154 = vmatprep.subr.mxu0 0.0
        %2155 = vmatpush1.msra.mxu0 %v1950
        %2156 = vmatprep.subr.mxu0 0.0
        %2157 = vmatpush1.msra.mxu0 %v1951
        %2158 = vmatprep.subr.mxu0 0.0
        %2159 = vmatpush1.msra.mxu0 %v1952
        %2160 = vmatprep.subr.mxu0 0.0
        %2161 = vmatpush1.msra.mxu0 %v1953
        %2162 = vmatprep.subr.mxu0 0.0
        %2163 = vmatpush1.msra.mxu0 %v1954
        %2164 = vmatprep.subr.mxu0 0.0
        %2165 = vmatpush1.msra.mxu0 %v1955
        %2166 = vmatprep.mubr.f32.mxu0 %v1859
        %2167 = vmatmul.mubr.f32.gmra.mrb[0].mxu0 %v1858
        %v2168 = vpop.f32.mrb[0].mxu0
        %v2169 = vadd.f32 %v2099, %v2168
        %v2170 = vpop.f32.mrb[0].mxu0
        %2171 = vdwg.mxu0
        %2172 = vst [vmem:[%s177] sm:$0xff] %v2169
        %s2173 = sand.u32 %s107, 1
        %s2174 = scalar_lea.sflag [#allocation6], %s2173
        %s2175 = sand.u32 %s107, 1
        %s2176 = smul.addr %s2175, 8
        %s2177 = scalar_lea.vmem [#allocation5], %s2176
        // Predicated region
        $region37: #{tpu_custom_call.1} parent=31 // pred_check
          %p2178 = pneg %p117
        $region38: #{tpu_custom_call.1} parent=31 // pred_check_branch
          %2180 = sbr.rel (%p2178) target = $region40
        $region39: #{tpu_custom_call.1} parent=31 // pred_region
          %s2182 = ssub.s32 128, 128
          %2183 = vsyncadd %s2174, %s2182
          %s2184 = smul.addr %s21, 2
          %s2185 = sadd.s32 %s22, %s2184
          %s2186 = smul.addr %s2185, 128
          %s2187 = scalar_lea.hbm %s3, %s2186
          %s2189 = sshll.u32 %s2177, 4
          %s2190 = int_to_ptr.vmem [resolvable:$true] %s2189
          %2192 = dma.vmem_to_hbm [thread:$0]  %s2190, 128, %s2187, %s2174
        $region40: #{tpu_custom_call.1} parent=31 // pred_fallthru
          _
      $region32: #{tpu_custom_call.1} parent=5 // pred_fallthru
        _
      %p2193 = scmp.le.s32.totalorder 2, %s12
      // Predicated region
      $region41: #{tpu_custom_call.1} parent=5 // pred_check
        %p2194 = pneg %p2193
      $region42: #{tpu_custom_call.1} parent=5 // pred_check_branch
        %2196 = sbr.rel (%p2194) target = $region44
      $region43: #{tpu_custom_call.1} parent=5 // pred_region
        %s2197 = ssub.s32 %s12, 2
        // Predicated region
        $region45: #{tpu_custom_call.1} parent=43 // pred_check
          %p2198 = pneg %p123
        $region46: #{tpu_custom_call.1} parent=43 // pred_check_branch
          %2200 = sbr.rel (%p2198) target = $region48
        $region47: #{tpu_custom_call.1} parent=43 // pred_region
          %s2201 = sand.u32 %s108, 1
          %s2202 = scalar_lea.sflag [#allocation6], %s2201
          %s2203 = sand.u32 %s108, 1
          %s2204 = smul.addr %s2203, 8
          %s2205 = scalar_lea.vmem [#allocation5], %s2204
          %2206 = dma.done %s2202, 128
        $region48: #{tpu_custom_call.1} parent=43 // pred_fallthru
          _
      $region44: #{tpu_custom_call.1} parent=5 // pred_fallthru
        _
    $region6: #{tpu_custom_call.1} parent=1 // loop_footer
      %s16 = sadd.s32 1, %s12
    $region7: #{tpu_custom_call.1} parent=1 // loop_footer_branch
      %11 = sbr.rel target = $region3
    $region8: #{tpu_custom_call.1} parent=1 // loop_exit
      _
    %2207 = vsyncpa [#allocation6], 1
    %s2208 = scalar_lea.sflag [#allocation6], 1
    %2209 = vsyncpa %s2208, 1

</llo_original>
